<compile_context>
chip_gen: v7x
topology: tpu7x:2x2x1
jax: 0.10.0
libtpu: 0.0.40
codegen_flags: <defaults>
</compile_context>

<pallas_src>
import numpy as np
import jax
import jax.numpy as jnp
from jax.experimental import pallas as pl
from jax.experimental.pallas import tpu as pltpu

PACK = 2          # logical rows packed per kernel row
LANE = 128        # TPU lane width


def _rup(a, m):
    return (a + m - 1) // m * m


def _blockdiag(W, n):
    r, c = W.shape
    out = np.zeros((n * r, n * c), W.dtype)
    for i in range(n):
        out[i * r:(i + 1) * r, i * c:(i + 1) * c] = W
    return out


# ----------------------------------------------------------------------------
# Host-side weight transforms: conv weights -> matmul-form (packed) weights.
# ----------------------------------------------------------------------------
def conv_to_matmul(W, b, T, pad):
    """W: (C_out, C_in, k) conv weight (cross-correlation along T), b: (C_out,).
    Returns (T*C_in, T*C_out) block-banded matrix and (T*C_out,) bias so that
    y[m, t*C_out + o] == conv1d(x)[m, o, t] for x laid out as (M, T*C_in)."""
    C_out, C_in, k = W.shape
    Wnp = np.asarray(W, np.float32)
    Wmat = np.zeros((T * C_in, T * C_out), np.float32)
    for t_out in range(T):
        for dt in range(k):
            t_in = t_out + dt - pad
            if 0 <= t_in < T:
                Wmat[t_in * C_in:(t_in + 1) * C_in,
                     t_out * C_out:(t_out + 1) * C_out] = Wnp[:, :, dt].T
    bvec = np.tile(np.asarray(b, np.float32), T)
    return Wmat, bvec


def build_head_matrix(raw, T, H):
    """Fuse the four output heads into one per-logical-row (T*H, F0) matrix.

    Column layout (F0 = T*ol + ol + T*oh + oh):
      [0, T*ol)     low head, col = o*T + t   (torch (ol,T) memory order, so a
                                               plain reshape == torch .view)
      [T*ol, +ol)   future_low head (full-T conv, single output step)
      [.., +T*oh)   high head, col = t*oh + o (time-major)
      [.., +oh)     future_high head (full-T conv)
    """
    Wl, bl = raw['low']
    Wfl, bfl = raw['flow']
    Wh, bh = raw['high']
    Wfh, bfh = raw['fhigh']
    ol, oh = Wl.shape[0], Wh.shape[0]

    # low head (1x1 conv), columns in torch conv memory order: col = o*T + t
    Wl_np = np.asarray(Wl, np.float32)
    bl_np = np.asarray(bl, np.float32)
    Wl_m = np.zeros((T * H, T * ol), np.float32)
    bl_m = np.zeros((T * ol,), np.float32)
    for o in range(ol):
        for t in range(T):
            Wl_m[t * H:(t + 1) * H, o * T + t] = Wl_np[o, :, 0]
            bl_m[o * T + t] = bl_np[o]

    # future_low head: kernel spans all T frames, single output step
    Wfl_m = np.asarray(Wfl, np.float32).transpose(2, 1, 0).reshape(T * H, ol)
    bfl_m = np.asarray(bfl, np.float32)

    # high head (1x1 conv), time-major columns: col = t*oh + o
    Wh_np = np.asarray(Wh, np.float32)
    Wh_m = np.zeros((T * H, T * oh), np.float32)
    bh_m = np.tile(np.asarray(bh, np.float32), T)
    for t in range(T):
        Wh_m[t * H:(t + 1) * H, t * oh:(t + 1) * oh] = Wh_np[:, :, 0].T

    # future_high head: kernel spans all T frames
    Wfh_m = np.asarray(Wfh, np.float32).transpose(2, 1, 0).reshape(T * H, oh)
    bfh_m = np.asarray(bfh, np.float32)

    W_all = np.concatenate([Wl_m, Wfl_m, Wh_m, Wfh_m], axis=1)
    b_all = np.concatenate([bl_m, bfl_m, bh_m, bfh_m])
    return W_all, b_all, dict(ol=ol, oh=oh, T=T)


def build_matmul_params(raw, T, H, stream_dtype=jnp.bfloat16, pack=PACK):
    """Matmul-form parameters: block-diagonal packed (pack logical rows per
    kernel row) and pre-cast ONCE to the streaming dtype (not per forward)."""
    backbone = []
    for (W, b) in raw['backbone']:
        Wm, bv = conv_to_matmul(W, b, T, pad=1)
        backbone.append((jnp.asarray(_blockdiag(Wm, pack), dtype=stream_dtype),
                         jnp.asarray(np.tile(bv, pack)[None, :],
                                     dtype=jnp.float32)))

    Wh, bh, info = build_head_matrix(raw, T, H)
    F0 = Wh.shape[1]
    # Pad the per-row head width so pack*Fh is lane-dense (multiple of 128).
    Fh = _rup(F0, max(1, LANE // pack))
    Wh_p = _blockdiag(np.pad(Wh, ((0, 0), (0, Fh - F0))), pack)
    bh_p = np.tile(np.pad(bh, (0, Fh - F0)), pack)[None, :]

    info.update(F0=F0, Fh=Fh, pack=pack)
    return dict(alphas=jnp.asarray(raw['alphas'], jnp.float32),
                backbone=backbone,
                head=(jnp.asarray(Wh_p, dtype=stream_dtype),
                      jnp.asarray(bh_p, dtype=jnp.float32)),
                info=info,
                stream_dtype=stream_dtype)


# ----------------------------------------------------------------------------
# The one fused kernel: backbone convs + PReLUs + residual + fused heads.
# ----------------------------------------------------------------------------
def _make_main_kernel(n_layers, use_residual):
    def kernel(alphas_ref, x_ref, *rest):
        layer_refs = rest[:2 * n_layers]
        wh_ref = rest[2 * n_layers]
        bh_ref = rest[2 * n_layers + 1]
        out_ref = rest[2 * n_layers + 2]

        x = x_ref[...]                                 # (tm, pack*T*C_in)
        h = x
        for i in range(n_layers):
            w = layer_refs[2 * i][...]                 # block-diagonal weight
            b = layer_refs[2 * i + 1][...]             # f32 bias
            h = jnp.dot(h.astype(w.dtype), w,
                        preferred_element_type=jnp.float32) + b
            a = alphas_ref[i]                          # PReLU alpha (SMEM scalar)
            h = jnp.where(h >= 0.0, h, a * h)
        a = alphas_ref[n_layers]                       # self.activation
        h = jnp.where(h >= 0.0, h, a * h)
        if use_residual:                               # only when shapes match
            h = h + x.astype(jnp.float32)

        wh = wh_ref[...]                               # fused packed head weight
        out = jnp.dot(h.astype(wh.dtype), wh,
                      preferred_element_type=jnp.float32) + bh_ref[...]
        out_ref[...] = out.astype(out_ref.dtype)       # one lane-dense slab
    return kernel


# ----------------------------------------------------------------------------
# Forward wrapper.
# ----------------------------------------------------------------------------
def ffp_forward(x, mat, use_residual, tm=2048,
                vmem_limit_bytes=32 * 1024 * 1024):
    B, P, T, N, C = x.shape
    M = B * P * N
    info = mat['info']
    ol, oh, F0, Fh, pack = (info['ol'], info['oh'], info['F0'],
                            info['Fh'], info['pack'])
    stream_dtype = mat['stream_dtype']
    Kin = T * C

    # (B,P,T,N,C) -> (M, T*C) with col = t*C + c, cast to the streaming dtype
    # in the same (fused) pass.
    # TODO(synk): fold this permute into the kernel (5-D BlockSpec + in-VMEM
    # transpose) to remove the remaining pre-kernel HBM copy.
    x2d = jnp.transpose(x, (0, 1, 3, 2, 4)).reshape(M, Kin).astype(stream_dtype)

    # Row tiling over PACKED rows; sublane-align (16 for bf16, 8 for f32).
    sub = 8 * 4 // np.dtype(stream_dtype).itemsize
    Mp = pl.cdiv(M, pack)
    tm_eff = max(sub, min(_rup(tm, sub), _rup(Mp, sub)))
    grid_m = pl.cdiv(Mp, tm_eff)
    if grid_m == 1 and Mp >= 2 * sub:      # keep >=2 blocks for v7x megacore
        tm_eff = _rup(pl.cdiv(Mp, 2), sub)
        grid_m = pl.cdiv(Mp, tm_eff)
    Mp_pad = grid_m * tm_eff
    M_pad = pack * Mp_pad
    if M_pad != M:
        x2d = jnp.pad(x2d, ((0, M_pad - M), (0, 0)))
    xp = x2d.reshape(Mp_pad, pack * Kin)   # free row-major pairing reshape

    n_layers = len(mat['backbone'])
    kernel = _make_main_kernel(n_layers, use_residual)

    args = [mat['alphas'], xp]
    in_specs = [pl.BlockSpec(memory_space=pltpu.MemorySpace.SMEM),  # PReLU alphas
                pl.BlockSpec((tm_eff, pack * Kin), lambda i: (i, 0))]
    for (w, b) in mat['backbone']:
        args += [w, b]
        in_specs += [pl.BlockSpec(w.shape, lambda i: (0, 0)),
                     pl.BlockSpec(b.shape, lambda i: (0, 0))]
    wh, bh = mat['head']
    args += [wh, bh]
    in_specs += [pl.BlockSpec(wh.shape, lambda i: (0, 0)),
                 pl.BlockSpec(bh.shape, lambda i: (0, 0))]

    Fp = pack * Fh
    out = pl.pallas_call(
        kernel,
        out_shape=jax.ShapeDtypeStruct((Mp_pad, Fp), stream_dtype),
        grid=(grid_m,),
        in_specs=in_specs,
        out_specs=pl.BlockSpec((tm_eff, Fp), lambda i: (i, 0)),
        compiler_params=pltpu.CompilerParams(
            dimension_semantics=("parallel",),
            vmem_limit_bytes=vmem_limit_bytes),
    )(*args)

    # De-interleave the packed rows (free row-major reshape) and slice the
    # useful head columns BEFORE casting to f32 (cast touches F0/Fh of bytes).
    heads = out.reshape(M_pad, Fh)[:M, :F0].astype(jnp.float32)

    o0 = 0
    low_rows = heads[:, o0:o0 + T * ol]; o0 += T * ol   # torch (ol,T) order
    flow_rows = heads[:, o0:o0 + ol]; o0 += ol
    high_rows = heads[:, o0:o0 + T * oh]; o0 += T * oh  # col = t*oh + o
    fhigh_rows = heads[:, o0:o0 + oh]

    # low heads: columns already in torch conv memory order; reshape == .view
    low_out = jnp.transpose(low_rows.reshape(B, P, N, T, ol), (0, 1, 3, 2, 4))
    future_low = flow_rows.reshape(B, P, N, ol)[:, :, None, :, :]
    out_low = jnp.concatenate([low_out, future_low], axis=2)

    # high heads: conv(mean_n x) == mean_n conv(x); pool the tiny head outputs.
    high_out = high_rows.reshape(B, P, N, T * oh).mean(axis=2).reshape(B, P, T, oh)
    future_high = fhigh_rows.reshape(B, P, N, oh).mean(axis=2).reshape(B, P, 1, oh)
    out_high = jnp.concatenate([high_out, future_high], axis=2)
    return out_high, out_low


# ----------------------------------------------------------------------------
# Pure-JAX reference (direct small convolutions) for validation.
# ----------------------------------------------------------------------------
def _prelu(x, a):
    return jnp.where(x >= 0, x, a * x)


def _conv1d_ref(x, W, b, pad):
    # x: (M, C_in, T), W: (C_out, C_in, k), b: (C_out,)
    M, C_in, T = x.shape
    C_out, _, k = W.shape
    xp = jnp.pad(x, ((0, 0), (0, 0), (pad, pad)))
    T_out = T + 2 * pad - k + 1
    outs = [jnp.einsum('mck,ock->mo', xp[:, :, t:t + k], W) + b for t in range(T_out)]
    return jnp.stack(outs, axis=-1)


def ffp_reference(x, raw):
    B, P, T, N, C = x.shape
    M = B * P * N
    xr = jnp.transpose(x, (0, 1, 3, 4, 2)).reshape(M, C, T)
    residual = xr
    h = xr
    for i, (W, b) in enumerate(raw['backbone']):
        h = _prelu(_conv1d_ref(h, W, b, pad=1), raw['alphas'][i])
    h = _prelu(h, raw['alphas'][len(raw['backbone'])])
    if h.shape == residual.shape:
        h = h + residual
    H = h.shape[1]
    BP = B * P
    pooled = h.reshape(B, P, N, H, T).mean(axis=2).reshape(BP, H, T)

    Wh, bh = raw['high']
    oh = Wh.shape[0]
    high_out = jnp.transpose(_conv1d_ref(pooled, Wh, bh, 0).reshape(B, P, oh, T),
                             (0, 1, 3, 2))
    Wfh, bfh = raw['fhigh']
    future_high = _conv1d_ref(pooled, Wfh, bfh, 0).reshape(B, P, 1, oh)

    Wl, bl = raw['low']
    ol = Wl.shape[0]
    low_out = jnp.transpose(_conv1d_ref(h, Wl, bl, 0).reshape(B, P, N, T, ol),
                            (0, 1, 3, 2, 4))
    Wfl, bfl = raw['flow']
    future_low = _conv1d_ref(h, Wfl, bfl, 0).reshape(B, P, N, ol)[:, :, None, :, :]

    return (jnp.concatenate([high_out, future_high], axis=2),
            jnp.concatenate([low_out, future_low], axis=2))


# ----------------------------------------------------------------------------
if __name__ == "__main__":
    B, P, N = 2, 3, 7          # M = 42: exercises the pairing + tail-pad path
    T = 4                      # T_inp == input_frames (needed for torch concat)
    in_channels = 16
    hidden = 16                # == in_channels so the residual branch runs
    out_high, out_low = 5, 3
    num_layers = 5
    ksize = 3

    key = jax.random.PRNGKey(0)
    keys = iter(jax.random.split(key, 64))

    def winit(shape, scale=0.1):
        return scale * jax.random.normal(next(keys), shape, dtype=jnp.float32)

    # Deterministic synthetic parameters (torch-style conv weight layout).
    raw = {'backbone': [],
           'alphas': jnp.array([0.25, 0.2, 0.15, 0.1, 0.3], dtype=jnp.float32)}
    cur = in_channels
    for _ in range(num_layers - 1):
        raw['backbone'].append((winit((hidden, cur, ksize)), winit((hidden,), 0.05)))
        cur = hidden
    raw['high'] = (winit((out_high, hidden, 1)), winit((out_high,), 0.05))
    raw['fhigh'] = (winit((out_high, hidden, T)), winit((out_high,), 0.05))
    raw['low'] = (winit((out_low, hidden, 1)), winit((out_low,), 0.05))
    raw['flow'] = (winit((out_low, hidden, T)), winit((out_low,), 0.05))

    x = jax.random.normal(next(keys), (B, P, T, N, in_channels), dtype=jnp.float32)
    use_residual = (hidden == in_channels)

    out_high_r, out_low_r = ffp_reference(x, raw)

    # --- f32 streaming path (exact-precision validation of the packed math) ---
    mat_f32 = build_matmul_params(raw, T, hidden, stream_dtype=jnp.float32)
    oh_k, ol_k = ffp_forward(x, mat_f32, use_residual=use_residual, tm=2048)
    jax.block_until_ready((oh_k, ol_k))
    assert oh_k.shape == (B, P, T + 1, out_high)
    assert ol_k.shape == (B, P, T + 1, N, out_low)
    np.testing.assert_allclose(np.asarray(oh_k), np.asarray(out_high_r),
                               rtol=1e-2, atol=1e-3)
    np.testing.assert_allclose(np.asarray(ol_k), np.asarray(out_low_r),
                               rtol=1e-2, atol=1e-3)

    # --- bf16 streaming path (DEFAULT: halves HBM traffic; f32 accumulation) ---
    mat_bf16 = build_matmul_params(raw, T, hidden)   # stream_dtype=bfloat16
    oh_b, ol_b = ffp_forward(x, mat_bf16, use_residual=use_residual, tm=2048)
    jax.block_until_ready((oh_b, ol_b))
    np.testing.assert_allclose(np.asarray(oh_b, dtype=np.float32),
                               np.asarray(out_high_r), rtol=1e-1, atol=1e-1)
    np.testing.assert_allclose(np.asarray(ol_b, dtype=np.float32),
                               np.asarray(out_low_r), rtol=1e-1, atol=1e-1)

    print("KERNEL_OK")
</pallas_src>

<mosaic_0001>
module attributes {stable_mosaic.version = 11 : i64} {
  func.func @kernel(%arg0: i32, %arg1: memref<5xf32, #tpu.memory_space<smem>>, %arg2: memref<16x128xf32, #tpu.memory_space<vmem>>, %arg3: memref<128x128xf32, #tpu.memory_space<vmem>>, %arg4: memref<1x128xf32, #tpu.memory_space<vmem>>, %arg5: memref<128x128xf32, #tpu.memory_space<vmem>>, %arg6: memref<1x128xf32, #tpu.memory_space<vmem>>, %arg7: memref<128x128xf32, #tpu.memory_space<vmem>>, %arg8: memref<1x128xf32, #tpu.memory_space<vmem>>, %arg9: memref<128x128xf32, #tpu.memory_space<vmem>>, %arg10: memref<1x128xf32, #tpu.memory_space<vmem>>, %arg11: memref<128x128xf32, #tpu.memory_space<vmem>>, %arg12: memref<1x128xf32, #tpu.memory_space<vmem>>, %arg13: memref<16x128xf32, #tpu.memory_space<vmem>>) attributes {dimension_semantics = [#tpu.dimension_semantics<parallel>], iteration_bounds = array<i64: 2>, scalar_prefetch = 0 : i64, scratch_operands = 0 : i64, tpu.core_type = #tpu.core_type<tc>, window_params = [{transform_indices = @transform_0, window_bounds = array<i64: 5>}, {transform_indices = @transform_1, window_bounds = array<i64: 16, 128>}, {pipeline_mode = #tpu.pipeline_mode<synchronous>, transform_indices = @transform_2, window_bounds = array<i64: 128, 128>}, {pipeline_mode = #tpu.pipeline_mode<synchronous>, transform_indices = @transform_3, window_bounds = array<i64: 1, 128>}, {pipeline_mode = #tpu.pipeline_mode<synchronous>, transform_indices = @transform_4, window_bounds = array<i64: 128, 128>}, {pipeline_mode = #tpu.pipeline_mode<synchronous>, transform_indices = @transform_5, window_bounds = array<i64: 1, 128>}, {pipeline_mode = #tpu.pipeline_mode<synchronous>, transform_indices = @transform_6, window_bounds = array<i64: 128, 128>}, {pipeline_mode = #tpu.pipeline_mode<synchronous>, transform_indices = @transform_7, window_bounds = array<i64: 1, 128>}, {pipeline_mode = #tpu.pipeline_mode<synchronous>, transform_indices = @transform_8, window_bounds = array<i64: 128, 128>}, {pipeline_mode = #tpu.pipeline_mode<synchronous>, transform_indices = @transform_9, window_bounds = array<i64: 1, 128>}, {pipeline_mode = #tpu.pipeline_mode<synchronous>, transform_indices = @transform_10, window_bounds = array<i64: 128, 128>}, {pipeline_mode = #tpu.pipeline_mode<synchronous>, transform_indices = @transform_11, window_bounds = array<i64: 1, 128>}, {transform_indices = @transform_12, window_bounds = array<i64: 16, 128>}]} {
    %c0 = arith.constant 0 : index
    %c0_0 = arith.constant 0 : index
    %0 = vector.load %arg2[%c0, %c0_0] : memref<16x128xf32, #tpu.memory_space<vmem>>, vector<16x128xf32>
    %c0_1 = arith.constant 0 : index
    %c0_2 = arith.constant 0 : index
    %1 = vector.load %arg3[%c0_1, %c0_2] : memref<128x128xf32, #tpu.memory_space<vmem>>, vector<128x128xf32>
    %c0_3 = arith.constant 0 : index
    %c0_4 = arith.constant 0 : index
    %2 = vector.load %arg4[%c0_3, %c0_4] : memref<1x128xf32, #tpu.memory_space<vmem>>, vector<1x128xf32>
    %cst = arith.constant dense<0.000000e+00> : vector<16x128xf32>
    %3 = tpu.matmul %0, %1, %cst {dimension_numbers = #tpu.dot_dimension_numbers<[1], [0], [0], [1], [0, 0, 1, 1], [], []>} : vector<16x128xf32>, vector<128x128xf32>, vector<16x128xf32> -> vector<16x128xf32>
    %4 = vector.broadcast %2 : vector<1x128xf32> to vector<16x128xf32>
    %5 = arith.addf %3, %4 : vector<16x128xf32>
    %c0_5 = arith.constant 0 : index
    %6 = memref.load %arg1[%c0_5] : memref<5xf32, #tpu.memory_space<smem>>
    %cst_6 = arith.constant 0.000000e+00 : f32
    %7 = vector.broadcast %cst_6 : f32 to vector<16x128xf32>
    %8 = arith.cmpf oge, %5, %7 : vector<16x128xf32>
    %9 = vector.broadcast %6 : f32 to vector<16x128xf32>
    %10 = arith.mulf %9, %5 : vector<16x128xf32>
    %11 = arith.select %8, %5, %10 : vector<16x128xi1>, vector<16x128xf32>
    %c0_7 = arith.constant 0 : index
    %c0_8 = arith.constant 0 : index
    %12 = vector.load %arg5[%c0_7, %c0_8] : memref<128x128xf32, #tpu.memory_space<vmem>>, vector<128x128xf32>
    %c0_9 = arith.constant 0 : index
    %c0_10 = arith.constant 0 : index
    %13 = vector.load %arg6[%c0_9, %c0_10] : memref<1x128xf32, #tpu.memory_space<vmem>>, vector<1x128xf32>
    %cst_11 = arith.constant dense<0.000000e+00> : vector<16x128xf32>
    %14 = tpu.matmul %11, %12, %cst_11 {dimension_numbers = #tpu.dot_dimension_numbers<[1], [0], [0], [1], [0, 0, 1, 1], [], []>} : vector<16x128xf32>, vector<128x128xf32>, vector<16x128xf32> -> vector<16x128xf32>
    %15 = vector.broadcast %13 : vector<1x128xf32> to vector<16x128xf32>
    %16 = arith.addf %14, %15 : vector<16x128xf32>
    %c1 = arith.constant 1 : index
    %17 = memref.load %arg1[%c1] : memref<5xf32, #tpu.memory_space<smem>>
    %cst_12 = arith.constant 0.000000e+00 : f32
    %18 = vector.broadcast %cst_12 : f32 to vector<16x128xf32>
    %19 = arith.cmpf oge, %16, %18 : vector<16x128xf32>
    %20 = vector.broadcast %17 : f32 to vector<16x128xf32>
    %21 = arith.mulf %20, %16 : vector<16x128xf32>
    %22 = arith.select %19, %16, %21 : vector<16x128xi1>, vector<16x128xf32>
    %c0_13 = arith.constant 0 : index
    %c0_14 = arith.constant 0 : index
    %23 = vector.load %arg7[%c0_13, %c0_14] : memref<128x128xf32, #tpu.memory_space<vmem>>, vector<128x128xf32>
    %c0_15 = arith.constant 0 : index
    %c0_16 = arith.constant 0 : index
    %24 = vector.load %arg8[%c0_15, %c0_16] : memref<1x128xf32, #tpu.memory_space<vmem>>, vector<1x128xf32>
    %cst_17 = arith.constant dense<0.000000e+00> : vector<16x128xf32>
    %25 = tpu.matmul %22, %23, %cst_17 {dimension_numbers = #tpu.dot_dimension_numbers<[1], [0], [0], [1], [0, 0, 1, 1], [], []>} : vector<16x128xf32>, vector<128x128xf32>, vector<16x128xf32> -> vector<16x128xf32>
    %26 = vector.broadcast %24 : vector<1x128xf32> to vector<16x128xf32>
    %27 = arith.addf %25, %26 : vector<16x128xf32>
    %c2 = arith.constant 2 : index
    %28 = memref.load %arg1[%c2] : memref<5xf32, #tpu.memory_space<smem>>
    %cst_18 = arith.constant 0.000000e+00 : f32
    %29 = vector.broadcast %cst_18 : f32 to vector<16x128xf32>
    %30 = arith.cmpf oge, %27, %29 : vector<16x128xf32>
    %31 = vector.broadcast %28 : f32 to vector<16x128xf32>
    %32 = arith.mulf %31, %27 : vector<16x128xf32>
    %33 = arith.select %30, %27, %32 : vector<16x128xi1>, vector<16x128xf32>
    %c0_19 = arith.constant 0 : index
    %c0_20 = arith.constant 0 : index
    %34 = vector.load %arg9[%c0_19, %c0_20] : memref<128x128xf32, #tpu.memory_space<vmem>>, vector<128x128xf32>
    %c0_21 = arith.constant 0 : index
    %c0_22 = arith.constant 0 : index
    %35 = vector.load %arg10[%c0_21, %c0_22] : memref<1x128xf32, #tpu.memory_space<vmem>>, vector<1x128xf32>
    %cst_23 = arith.constant dense<0.000000e+00> : vector<16x128xf32>
    %36 = tpu.matmul %33, %34, %cst_23 {dimension_numbers = #tpu.dot_dimension_numbers<[1], [0], [0], [1], [0, 0, 1, 1], [], []>} : vector<16x128xf32>, vector<128x128xf32>, vector<16x128xf32> -> vector<16x128xf32>
    %37 = vector.broadcast %35 : vector<1x128xf32> to vector<16x128xf32>
    %38 = arith.addf %36, %37 : vector<16x128xf32>
    %c3 = arith.constant 3 : index
    %39 = memref.load %arg1[%c3] : memref<5xf32, #tpu.memory_space<smem>>
    %cst_24 = arith.constant 0.000000e+00 : f32
    %40 = vector.broadcast %cst_24 : f32 to vector<16x128xf32>
    %41 = arith.cmpf oge, %38, %40 : vector<16x128xf32>
    %42 = vector.broadcast %39 : f32 to vector<16x128xf32>
    %43 = arith.mulf %42, %38 : vector<16x128xf32>
    %44 = arith.select %41, %38, %43 : vector<16x128xi1>, vector<16x128xf32>
    %c4 = arith.constant 4 : index
    %45 = memref.load %arg1[%c4] : memref<5xf32, #tpu.memory_space<smem>>
    %cst_25 = arith.constant 0.000000e+00 : f32
    %46 = vector.broadcast %cst_25 : f32 to vector<16x128xf32>
    %47 = arith.cmpf oge, %44, %46 : vector<16x128xf32>
    %48 = vector.broadcast %45 : f32 to vector<16x128xf32>
    %49 = arith.mulf %48, %44 : vector<16x128xf32>
    %50 = arith.select %47, %44, %49 : vector<16x128xi1>, vector<16x128xf32>
    %51 = arith.addf %50, %0 : vector<16x128xf32>
    %c0_26 = arith.constant 0 : index
    %c0_27 = arith.constant 0 : index
    %52 = vector.load %arg11[%c0_26, %c0_27] : memref<128x128xf32, #tpu.memory_space<vmem>>, vector<128x128xf32>
    %cst_28 = arith.constant dense<0.000000e+00> : vector<16x128xf32>
    %53 = tpu.matmul %51, %52, %cst_28 {dimension_numbers = #tpu.dot_dimension_numbers<[1], [0], [0], [1], [0, 0, 1, 1], [], []>} : vector<16x128xf32>, vector<128x128xf32>, vector<16x128xf32> -> vector<16x128xf32>
    %c0_29 = arith.constant 0 : index
    %c0_30 = arith.constant 0 : index
    %54 = vector.load %arg12[%c0_29, %c0_30] : memref<1x128xf32, #tpu.memory_space<vmem>>, vector<1x128xf32>
    %55 = vector.broadcast %54 : vector<1x128xf32> to vector<16x128xf32>
    %56 = arith.addf %53, %55 : vector<16x128xf32>
    %c0_31 = arith.constant 0 : index
    %c0_32 = arith.constant 0 : index
    %57 = vector.load %arg13[%c0_31, %c0_32] : memref<16x128xf32, #tpu.memory_space<vmem>>, vector<16x128xf32>
    tpu.vector_store %arg13[%c0_31, %c0_32], %56 {strides = array<i32>} : memref<16x128xf32, #tpu.memory_space<vmem>>, vector<16x128xf32>,
    return
  }
  func.func @transform_0(%arg0: i32) -> i32 {
    %c0_i32 = arith.constant 0 : i32
    %c0_i32_0 = arith.constant 0 : i32
    return %c0_i32 : i32
  }
  func.func @transform_1(%arg0: i32) -> (i32, i32) {
    %c0_i32 = arith.constant 0 : i32
    %c0_i32_0 = arith.constant 0 : i32
    return %arg0, %c0_i32 : i32, i32
  }
  func.func @transform_2(%arg0: i32) -> (i32, i32) {
    %c0_i32 = arith.constant 0 : i32
    %c0_i32_0 = arith.constant 0 : i32
    %c0_i32_1 = arith.constant 0 : i32
    return %c0_i32, %c0_i32_0 : i32, i32
  }
  func.func @transform_3(%arg0: i32) -> (i32, i32) {
    %c0_i32 = arith.constant 0 : i32
    %c0_i32_0 = arith.constant 0 : i32
    %c0_i32_1 = arith.constant 0 : i32
    return %c0_i32, %c0_i32_0 : i32, i32
  }
  func.func @transform_4(%arg0: i32) -> (i32, i32) {
    %c0_i32 = arith.constant 0 : i32
    %c0_i32_0 = arith.constant 0 : i32
    %c0_i32_1 = arith.constant 0 : i32
    return %c0_i32, %c0_i32_0 : i32, i32
  }
  func.func @transform_5(%arg0: i32) -> (i32, i32) {
    %c0_i32 = arith.constant 0 : i32
    %c0_i32_0 = arith.constant 0 : i32
    %c0_i32_1 = arith.constant 0 : i32
    return %c0_i32, %c0_i32_0 : i32, i32
  }
  func.func @transform_6(%arg0: i32) -> (i32, i32) {
    %c0_i32 = arith.constant 0 : i32
    %c0_i32_0 = arith.constant 0 : i32
    %c0_i32_1 = arith.constant 0 : i32
    return %c0_i32, %c0_i32_0 : i32, i32
  }
  func.func @transform_7(%arg0: i32) -> (i32, i32) {
    %c0_i32 = arith.constant 0 : i32
    %c0_i32_0 = arith.constant 0 : i32
    %c0_i32_1 = arith.constant 0 : i32
    return %c0_i32, %c0_i32_0 : i32, i32
  }
  func.func @transform_8(%arg0: i32) -> (i32, i32) {
    %c0_i32 = arith.constant 0 : i32
    %c0_i32_0 = arith.constant 0 : i32
    %c0_i32_1 = arith.constant 0 : i32
    return %c0_i32, %c0_i32_0 : i32, i32
  }
  func.func @transform_9(%arg0: i32) -> (i32, i32) {
    %c0_i32 = arith.constant 0 : i32
    %c0_i32_0 = arith.constant 0 : i32
    %c0_i32_1 = arith.constant 0 : i32
    return %c0_i32, %c0_i32_0 : i32, i32
  }
  func.func @transform_10(%arg0: i32) -> (i32, i32) {
    %c0_i32 = arith.constant 0 : i32
    %c0_i32_0 = arith.constant 0 : i32
    %c0_i32_1 = arith.constant 0 : i32
    return %c0_i32, %c0_i32_0 : i32, i32
  }
  func.func @transform_11(%arg0: i32) -> (i32, i32) {
    %c0_i32 = arith.constant 0 : i32
    %c0_i32_0 = arith.constant 0 : i32
    %c0_i32_1 = arith.constant 0 : i32
    return %c0_i32, %c0_i32_0 : i32, i32
  }
  func.func @transform_12(%arg0: i32) -> (i32, i32) {
    %c0_i32 = arith.constant 0 : i32
    %c0_i32_0 = arith.constant 0 : i32
    return %arg0, %c0_i32 : i32, i32
  }
}

</mosaic_0001>

<llo_original>
// kernel: tpu_custom_call.1
$region0: #{tpu_custom_call.1}
  #allocation0 [shape = 'u32[]', space=smem, size = 0x4, offset = 0x4, fixed_abs, tag = 'smem constant byte address 0x4 - core index']
  #allocation1 [shape = 'u32[144,128]{1,0:T(1,128)}', space=vmem, size = 0x12000, scoped, tag = 'internal scratch']
  %s0 = inlined_call_operand.hbm [shape: f32[5], index: 0, kind: input, shape index: {}]
  %s1 = inlined_call_operand.hbm [shape: f32[32,128], index: 1, kind: input, shape index: {}]
  %s2 = inlined_call_operand.hbm [shape: f32[128,128], index: 2, kind: input, shape index: {}]
  %s3 = inlined_call_operand.vmem [shape: f32[1,128], index: 3, kind: input, shape index: {}]
  %s4 = inlined_call_operand.hbm [shape: f32[128,128], index: 4, kind: input, shape index: {}]
  %s5 = inlined_call_operand.vmem [shape: f32[1,128], index: 5, kind: input, shape index: {}]
  %s6 = inlined_call_operand.hbm [shape: f32[128,128], index: 6, kind: input, shape index: {}]
  %s7 = inlined_call_operand.vmem [shape: f32[1,128], index: 7, kind: input, shape index: {}]
  %s8 = inlined_call_operand.hbm [shape: f32[128,128], index: 8, kind: input, shape index: {}]
  %s9 = inlined_call_operand.vmem [shape: f32[1,128], index: 9, kind: input, shape index: {}]
  %s10 = inlined_call_operand.hbm [shape: f32[128,128], index: 10, kind: input, shape index: {}]
  %s11 = inlined_call_operand.vmem [shape: f32[1,128], index: 11, kind: input, shape index: {}]
  %s12 = inlined_call_operand.hbm [shape: f32[32,128], index: 12, kind: output, shape index: {}]
  %s13 = sld [smem:[#allocation0]]
  $region109: #{tpu_custom_call.1} parent=0
    _
  %s15 = ssub.s32 1, %s13
  %s16 = scalar_select 0, %s15, %s13
  $region1: #{tpu_custom_call.1} parent=0
    #allocation2 [shape = 'u8[512]{0}', space=smem, size = 0x200, scoped, tag = 'input window, operand 0, single buffered']
    #allocation3 [shape = 's32[2]{0}', space=sflag, size = 0x8, scoped, tag = 'scoped memory for tpu_custom_call.1']
    #allocation4 [shape = 's32[2]{0}', space=sflag, size = 0x8, scoped, tag = 'scoped memory for tpu_custom_call.1']
    #allocation5 [shape = 's32[2]{0}', space=sflag, size = 0x8, scoped, tag = 'scoped memory for tpu_custom_call.1']
    #allocation6 [shape = 'u8[16384]{0}', space=vmem, size = 0x4000, scoped, tag = 'input window, operand 1']
    #allocation7 [shape = 'u8[65536]{0}', space=vmem, size = 0x10000, scoped, tag = 'input window, operand 2, single buffered']
    #allocation8 [shape = 's32[1]{0}', space=sflag, size = 0x4, scoped, tag = 'scoped memory for tpu_custom_call.1']
    #allocation9 [shape = 'u8[65536]{0}', space=vmem, size = 0x10000, scoped, tag = 'input window, operand 4, single buffered']
    #allocation10 [shape = 'u8[65536]{0}', space=vmem, size = 0x10000, scoped, tag = 'input window, operand 6, single buffered']
    #allocation11 [shape = 's32[1]{0}', space=sflag, size = 0x4, scoped, tag = 'scoped memory for tpu_custom_call.1']
    #allocation12 [shape = 'u8[65536]{0}', space=vmem, size = 0x10000, scoped, tag = 'input window, operand 8, single buffered']
    #allocation13 [shape = 'u8[65536]{0}', space=vmem, size = 0x10000, scoped, tag = 'input window, operand 10, single buffered']
    #allocation14 [shape = 's32[1]{0}', space=sflag, size = 0x4, scoped, tag = 'scoped memory for tpu_custom_call.1']
    #allocation15 [shape = 'u8[16384]{0}', space=vmem, size = 0x4000, scoped, tag = 'output window, operand 0']
    %17 = vsyncpa [#allocation5], 0
    %18 = vsyncpa [#allocation3], 0
    %s19 = scalar_lea.sflag [#allocation3], 1
    %20 = vsyncpa %s19, 0
    %21 = vsyncpa [#allocation8], 0
    %22 = vsyncpa [#allocation11], 0
    %23 = vsyncpa [#allocation14], 0
    %24 = vsyncpa [#allocation4], 0
    %s25 = scalar_lea.sflag [#allocation4], 1
    %26 = vsyncpa %s25, 0
    loop: start=0, step=1, limit=4
    $region2: #{tpu_custom_call.1} parent=1 // loop_pre_header
      _
    $region3: #{tpu_custom_call.1} parent=1 // loop_header
      %s28 = sphi 0, %s32
      %p29 = scmp.ge.s32.totalorder %s28, 4
      %s36 = sphi 0, %s36
      %s38 = sphi 0, %s36
      %s39 = sphi 0, %s38
      %s53 = sphi 0, %s39
      %s59 = sphi 0, %s61
      %s62 = sphi 0, %s59
      %s63 = sphi 0, %s62
      %s79 = sphi 0, %s63
      %s83 = sphi 0, %s83
      %s85 = sphi 0, %s83
      %s86 = sphi 0, %s85
      %s100 = sphi 0, %s86
      %s104 = sphi 0, %s104
      %s106 = sphi 0, %s104
      %s107 = sphi 0, %s106
      %s121 = sphi 0, %s107
      %s125 = sphi 0, %s125
      %s127 = sphi 0, %s125
      %s128 = sphi 0, %s127
      %s142 = sphi 0, %s128
      %s146 = sphi 0, %s146
      %s148 = sphi 0, %s146
      %s149 = sphi 0, %s148
      %s163 = sphi 0, %s149
      %s167 = sphi 0, %s167
      %s169 = sphi 0, %s167
      %s170 = sphi 0, %s169
      %s184 = sphi 0, %s170
      %s188 = sphi 0, %s188
      %s190 = sphi 0, %s188
      %s191 = sphi 0, %s190
      %s205 = sphi 0, %s191
      %s209 = sphi 0, %s209
      %s211 = sphi 0, %s209
      %s212 = sphi 0, %s211
      %s226 = sphi 0, %s212
      %s230 = sphi 0, %s230
      %s232 = sphi 0, %s230
      %s233 = sphi 0, %s232
      %s247 = sphi 0, %s233
      %s251 = sphi 0, %s251
      %s253 = sphi 0, %s251
      %s254 = sphi 0, %s253
      %s268 = sphi 0, %s254
      %s272 = sphi 0, %s272
      %s274 = sphi 0, %s272
      %s275 = sphi 0, %s274
      %s289 = sphi 0, %s275
      %s295 = sphi 0, %s297
      %s298 = sphi 0, %s295
      %s299 = sphi 0, %s298
      %s315 = sphi 0, %s299
    $region4: #{tpu_custom_call.1} parent=1 // loop_header_branch
      %31 = sbr.rel (%p29) target = $region8
    $region5: #{tpu_custom_call.1} parent=1 // loop_body
      %s33 = ssub.s32 %s28, 1
      %s34 = ssub.s32 %s28, 2
      %s35 = sadd.s32 %s28, 1
      %s37 = sadd.s32 %s36, 1
      %p40 = scmp.eq.s32.totalorder %s28, 1
      %p41 = scmp.ne.s32.totalorder %s36, %s38
      %p42 = scmp.eq.s32.totalorder %s28, 0
      %p43 = por %p41, %p42
      %p44 = scmp.ne.s32.totalorder %s36, %s38
      %p45 = scmp.eq.s32.totalorder %s33, 1
      %p46 = por %p44, %p45
      %p47 = scmp.ne.s32.totalorder %s38, %s39
      %p48 = scmp.eq.s32.totalorder %s33, 0
      %p49 = por %p47, %p48
      %p50 = scmp.ne.s32.totalorder %s38, %s39
      %p51 = scmp.eq.s32.totalorder %s34, 1
      %p52 = por %p50, %p51
      %p54 = scmp.ne.s32.totalorder %s39, %s53
      %p55 = scmp.eq.s32.totalorder %s34, 0
      %p56 = por %p54, %p55
      %s57 = ssub.s32 %s28, %s35
      %p58 = scmp.eq.s32.totalorder %s57, 0
      %s60 = sadd.s32 %s59, 1
      %s61 = scalar_select %p58, %s59, %s60
      %p64 = pneg %p58
      %p65 = scmp.eq.s32.totalorder %s28, 1
      %p66 = por %p64, %p65
      %p67 = scmp.ne.s32.totalorder %s59, %s62
      %p68 = scmp.eq.s32.totalorder %s28, 0
      %p69 = por %p67, %p68
      %p70 = scmp.ne.s32.totalorder %s59, %s62
      %p71 = scmp.eq.s32.totalorder %s33, 1
      %p72 = por %p70, %p71
      %p73 = scmp.ne.s32.totalorder %s62, %s63
      %p74 = scmp.eq.s32.totalorder %s33, 0
      %p75 = por %p73, %p74
      %p76 = scmp.ne.s32.totalorder %s62, %s63
      %p77 = scmp.eq.s32.totalorder %s34, 1
      %p78 = por %p76, %p77
      %p80 = scmp.ne.s32.totalorder %s63, %s79
      %p81 = scmp.eq.s32.totalorder %s34, 0
      %p82 = por %p80, %p81
      %s84 = sadd.s32 %s83, 1
      %p87 = scmp.eq.s32.totalorder %s28, 1
      %p88 = scmp.ne.s32.totalorder %s83, %s85
      %p89 = scmp.eq.s32.totalorder %s28, 0
      %p90 = por %p88, %p89
      %p91 = scmp.ne.s32.totalorder %s83, %s85
      %p92 = scmp.eq.s32.totalorder %s33, 1
      %p93 = por %p91, %p92
      %p94 = scmp.ne.s32.totalorder %s85, %s86
      %p95 = scmp.eq.s32.totalorder %s33, 0
      %p96 = por %p94, %p95
      %p97 = scmp.ne.s32.totalorder %s85, %s86
      %p98 = scmp.eq.s32.totalorder %s34, 1
      %p99 = por %p97, %p98
      %p101 = scmp.ne.s32.totalorder %s86, %s100
      %p102 = scmp.eq.s32.totalorder %s34, 0
      %p103 = por %p101, %p102
      %s105 = sadd.s32 %s104, 1
      %p108 = scmp.eq.s32.totalorder %s28, 1
      %p109 = scmp.ne.s32.totalorder %s104, %s106
      %p110 = scmp.eq.s32.totalorder %s28, 0
      %p111 = por %p109, %p110
      %p112 = scmp.ne.s32.totalorder %s104, %s106
      %p113 = scmp.eq.s32.totalorder %s33, 1
      %p114 = por %p112, %p113
      %p115 = scmp.ne.s32.totalorder %s106, %s107
      %p116 = scmp.eq.s32.totalorder %s33, 0
      %p117 = por %p115, %p116
      %p118 = scmp.ne.s32.totalorder %s106, %s107
      %p119 = scmp.eq.s32.totalorder %s34, 1
      %p120 = por %p118, %p119
      %p122 = scmp.ne.s32.totalorder %s107, %s121
      %p123 = scmp.eq.s32.totalorder %s34, 0
      %p124 = por %p122, %p123
      %s126 = sadd.s32 %s125, 1
      %p129 = scmp.eq.s32.totalorder %s28, 1
      %p130 = scmp.ne.s32.totalorder %s125, %s127
      %p131 = scmp.eq.s32.totalorder %s28, 0
      %p132 = por %p130, %p131
      %p133 = scmp.ne.s32.totalorder %s125, %s127
      %p134 = scmp.eq.s32.totalorder %s33, 1
      %p135 = por %p133, %p134
      %p136 = scmp.ne.s32.totalorder %s127, %s128
      %p137 = scmp.eq.s32.totalorder %s33, 0
      %p138 = por %p136, %p137
      %p139 = scmp.ne.s32.totalorder %s127, %s128
      %p140 = scmp.eq.s32.totalorder %s34, 1
      %p141 = por %p139, %p140
      %p143 = scmp.ne.s32.totalorder %s128, %s142
      %p144 = scmp.eq.s32.totalorder %s34, 0
      %p145 = por %p143, %p144
      %s147 = sadd.s32 %s146, 1
      %p150 = scmp.eq.s32.totalorder %s28, 1
      %p151 = scmp.ne.s32.totalorder %s146, %s148
      %p152 = scmp.eq.s32.totalorder %s28, 0
      %p153 = por %p151, %p152
      %p154 = scmp.ne.s32.totalorder %s146, %s148
      %p155 = scmp.eq.s32.totalorder %s33, 1
      %p156 = por %p154, %p155
      %p157 = scmp.ne.s32.totalorder %s148, %s149
      %p158 = scmp.eq.s32.totalorder %s33, 0
      %p159 = por %p157, %p158
      %p160 = scmp.ne.s32.totalorder %s148, %s149
      %p161 = scmp.eq.s32.totalorder %s34, 1
      %p162 = por %p160, %p161
      %p164 = scmp.ne.s32.totalorder %s149, %s163
      %p165 = scmp.eq.s32.totalorder %s34, 0
      %p166 = por %p164, %p165
      %s168 = sadd.s32 %s167, 1
      %p171 = scmp.eq.s32.totalorder %s28, 1
      %p172 = scmp.ne.s32.totalorder %s167, %s169
      %p173 = scmp.eq.s32.totalorder %s28, 0
      %p174 = por %p172, %p173
      %p175 = scmp.ne.s32.totalorder %s167, %s169
      %p176 = scmp.eq.s32.totalorder %s33, 1
      %p177 = por %p175, %p176
      %p178 = scmp.ne.s32.totalorder %s169, %s170
      %p179 = scmp.eq.s32.totalorder %s33, 0
      %p180 = por %p178, %p179
      %p181 = scmp.ne.s32.totalorder %s169, %s170
      %p182 = scmp.eq.s32.totalorder %s34, 1
      %p183 = por %p181, %p182
      %p185 = scmp.ne.s32.totalorder %s170, %s184
      %p186 = scmp.eq.s32.totalorder %s34, 0
      %p187 = por %p185, %p186
      %s189 = sadd.s32 %s188, 1
      %p192 = scmp.eq.s32.totalorder %s28, 1
      %p193 = scmp.ne.s32.totalorder %s188, %s190
      %p194 = scmp.eq.s32.totalorder %s28, 0
      %p195 = por %p193, %p194
      %p196 = scmp.ne.s32.totalorder %s188, %s190
      %p197 = scmp.eq.s32.totalorder %s33, 1
      %p198 = por %p196, %p197
      %p199 = scmp.ne.s32.totalorder %s190, %s191
      %p200 = scmp.eq.s32.totalorder %s33, 0
      %p201 = por %p199, %p200
      %p202 = scmp.ne.s32.totalorder %s190, %s191
      %p203 = scmp.eq.s32.totalorder %s34, 1
      %p204 = por %p202, %p203
      %p206 = scmp.ne.s32.totalorder %s191, %s205
      %p207 = scmp.eq.s32.totalorder %s34, 0
      %p208 = por %p206, %p207
      %s210 = sadd.s32 %s209, 1
      %p213 = scmp.eq.s32.totalorder %s28, 1
      %p214 = scmp.ne.s32.totalorder %s209, %s211
      %p215 = scmp.eq.s32.totalorder %s28, 0
      %p216 = por %p214, %p215
      %p217 = scmp.ne.s32.totalorder %s209, %s211
      %p218 = scmp.eq.s32.totalorder %s33, 1
      %p219 = por %p217, %p218
      %p220 = scmp.ne.s32.totalorder %s211, %s212
      %p221 = scmp.eq.s32.totalorder %s33, 0
      %p222 = por %p220, %p221
      %p223 = scmp.ne.s32.totalorder %s211, %s212
      %p224 = scmp.eq.s32.totalorder %s34, 1
      %p225 = por %p223, %p224
      %p227 = scmp.ne.s32.totalorder %s212, %s226
      %p228 = scmp.eq.s32.totalorder %s34, 0
      %p229 = por %p227, %p228
      %s231 = sadd.s32 %s230, 1
      %p234 = scmp.eq.s32.totalorder %s28, 1
      %p235 = scmp.ne.s32.totalorder %s230, %s232
      %p236 = scmp.eq.s32.totalorder %s28, 0
      %p237 = por %p235, %p236
      %p238 = scmp.ne.s32.totalorder %s230, %s232
      %p239 = scmp.eq.s32.totalorder %s33, 1
      %p240 = por %p238, %p239
      %p241 = scmp.ne.s32.totalorder %s232, %s233
      %p242 = scmp.eq.s32.totalorder %s33, 0
      %p243 = por %p241, %p242
      %p244 = scmp.ne.s32.totalorder %s232, %s233
      %p245 = scmp.eq.s32.totalorder %s34, 1
      %p246 = por %p244, %p245
      %p248 = scmp.ne.s32.totalorder %s233, %s247
      %p249 = scmp.eq.s32.totalorder %s34, 0
      %p250 = por %p248, %p249
      %s252 = sadd.s32 %s251, 1
      %p255 = scmp.eq.s32.totalorder %s28, 1
      %p256 = scmp.ne.s32.totalorder %s251, %s253
      %p257 = scmp.eq.s32.totalorder %s28, 0
      %p258 = por %p256, %p257
      %p259 = scmp.ne.s32.totalorder %s251, %s253
      %p260 = scmp.eq.s32.totalorder %s33, 1
      %p261 = por %p259, %p260
      %p262 = scmp.ne.s32.totalorder %s253, %s254
      %p263 = scmp.eq.s32.totalorder %s33, 0
      %p264 = por %p262, %p263
      %p265 = scmp.ne.s32.totalorder %s253, %s254
      %p266 = scmp.eq.s32.totalorder %s34, 1
      %p267 = por %p265, %p266
      %p269 = scmp.ne.s32.totalorder %s254, %s268
      %p270 = scmp.eq.s32.totalorder %s34, 0
      %p271 = por %p269, %p270
      %s273 = sadd.s32 %s272, 1
      %p276 = scmp.eq.s32.totalorder %s28, 1
      %p277 = scmp.ne.s32.totalorder %s272, %s274
      %p278 = scmp.eq.s32.totalorder %s28, 0
      %p279 = por %p277, %p278
      %p280 = scmp.ne.s32.totalorder %s272, %s274
      %p281 = scmp.eq.s32.totalorder %s33, 1
      %p282 = por %p280, %p281
      %p283 = scmp.ne.s32.totalorder %s274, %s275
      %p284 = scmp.eq.s32.totalorder %s33, 0
      %p285 = por %p283, %p284
      %p286 = scmp.ne.s32.totalorder %s274, %s275
      %p287 = scmp.eq.s32.totalorder %s34, 1
      %p288 = por %p286, %p287
      %p290 = scmp.ne.s32.totalorder %s275, %s289
      %p291 = scmp.eq.s32.totalorder %s34, 0
      %p292 = por %p290, %p291
      %s293 = ssub.s32 %s28, %s35
      %p294 = scmp.eq.s32.totalorder %s293, 0
      %s296 = sadd.s32 %s295, 1
      %s297 = scalar_select %p294, %s295, %s296
      %p300 = pneg %p294
      %p301 = scmp.eq.s32.totalorder %s28, 1
      %p302 = por %p300, %p301
      %p303 = scmp.ne.s32.totalorder %s295, %s298
      %p304 = scmp.eq.s32.totalorder %s28, 0
      %p305 = por %p303, %p304
      %p306 = scmp.ne.s32.totalorder %s295, %s298
      %p307 = scmp.eq.s32.totalorder %s33, 1
      %p308 = por %p306, %p307
      %p309 = scmp.ne.s32.totalorder %s298, %s299
      %p310 = scmp.eq.s32.totalorder %s33, 0
      %p311 = por %p309, %p310
      %p312 = scmp.ne.s32.totalorder %s298, %s299
      %p313 = scmp.eq.s32.totalorder %s34, 1
      %p314 = por %p312, %p313
      %p316 = scmp.ne.s32.totalorder %s299, %s315
      %p317 = scmp.eq.s32.totalorder %s34, 0
      %p318 = por %p316, %p317
      %p319 = scmp.le.s32.totalorder 1, %s28
      %p320 = scmp.lt.s32.totalorder %s28, 3
      %p321 = pnand %p319, %p320
      %p322 = pneg %p321
      // Predicated region
      $region9: #{tpu_custom_call.1} parent=5 // pred_check
        _
      $region10: #{tpu_custom_call.1} parent=5 // pred_check_branch
        %324 = sbr.rel (%p321) target = $region12
      $region11: #{tpu_custom_call.1} parent=5 // pred_region
        %s325 = ssub.s32 %s28, 1
        // Predicated region
        $region13: #{tpu_custom_call.1} parent=11 // pred_check
          %p326 = pneg %p49
        $region14: #{tpu_custom_call.1} parent=11 // pred_check_branch
          %328 = sbr.rel (%p326) target = $region16
        $region15: #{tpu_custom_call.1} parent=11 // pred_region
          %s330 = ssub.s32 16, 16
          %331 = vsyncadd [#allocation5], %s330
          %334 = dma.hbm_to_smem %s0, 16, [#allocation2], [#allocation5]
        $region16: #{tpu_custom_call.1} parent=11 // pred_fallthru
          _
        // Predicated region
        $region17: #{tpu_custom_call.1} parent=11 // pred_check
          %p335 = pneg %p96
        $region18: #{tpu_custom_call.1} parent=11 // pred_check_branch
          %337 = sbr.rel (%p335) target = $region20
        $region19: #{tpu_custom_call.1} parent=11 // pred_region
          %s339 = ssub.s32 2048, 2048
          %340 = vsyncadd [#allocation8], %s339
          %s341 = sshll.u32 [#allocation7], 4
          %s342 = int_to_ptr.vmem [resolvable:$true] %s341
          %347 = dma.hbm_to_vmem [thread:$0]  %s2, 2048, %s342, [#allocation8], 128, 128, 8
        $region20: #{tpu_custom_call.1} parent=11 // pred_fallthru
          _
        // Predicated region
        $region21: #{tpu_custom_call.1} parent=11 // pred_check
          %p348 = pneg %p117
        $region22: #{tpu_custom_call.1} parent=11 // pred_check_branch
          %350 = sbr.rel (%p348) target = $region24
        $region23: #{tpu_custom_call.1} parent=11 // pred_region
          _
        $region24: #{tpu_custom_call.1} parent=11 // pred_fallthru
          _
        // Predicated region
        $region25: #{tpu_custom_call.1} parent=11 // pred_check
          %p351 = pneg %p138
        $region26: #{tpu_custom_call.1} parent=11 // pred_check_branch
          %353 = sbr.rel (%p351) target = $region28
        $region27: #{tpu_custom_call.1} parent=11 // pred_region
          %s355 = ssub.s32 2048, 2048
          %356 = vsyncadd [#allocation8], %s355
          %s357 = sshll.u32 [#allocation9], 4
          %s358 = int_to_ptr.vmem [resolvable:$true] %s357
          %363 = dma.hbm_to_vmem [thread:$0]  %s4, 2048, %s358, [#allocation8], 128, 128, 8
        $region28: #{tpu_custom_call.1} parent=11 // pred_fallthru
          _
        // Predicated region
        $region29: #{tpu_custom_call.1} parent=11 // pred_check
          %p364 = pneg %p159
        $region30: #{tpu_custom_call.1} parent=11 // pred_check_branch
          %366 = sbr.rel (%p364) target = $region32
        $region31: #{tpu_custom_call.1} parent=11 // pred_region
          _
        $region32: #{tpu_custom_call.1} parent=11 // pred_fallthru
          _
        // Predicated region
        $region33: #{tpu_custom_call.1} parent=11 // pred_check
          %p367 = pneg %p180
        $region34: #{tpu_custom_call.1} parent=11 // pred_check_branch
          %369 = sbr.rel (%p367) target = $region36
        $region35: #{tpu_custom_call.1} parent=11 // pred_region
          %s371 = ssub.s32 2048, 2048
          %372 = vsyncadd [#allocation11], %s371
          %s373 = sshll.u32 [#allocation10], 4
          %s374 = int_to_ptr.vmem [resolvable:$true] %s373
          %379 = dma.hbm_to_vmem [thread:$0]  %s6, 2048, %s374, [#allocation11], 128, 128, 8
        $region36: #{tpu_custom_call.1} parent=11 // pred_fallthru
          _
        // Predicated region
        $region37: #{tpu_custom_call.1} parent=11 // pred_check
          %p380 = pneg %p201
        $region38: #{tpu_custom_call.1} parent=11 // pred_check_branch
          %382 = sbr.rel (%p380) target = $region40
        $region39: #{tpu_custom_call.1} parent=11 // pred_region
          _
        $region40: #{tpu_custom_call.1} parent=11 // pred_fallthru
          _
        // Predicated region
        $region41: #{tpu_custom_call.1} parent=11 // pred_check
          %p383 = pneg %p222
        $region42: #{tpu_custom_call.1} parent=11 // pred_check_branch
          %385 = sbr.rel (%p383) target = $region44
        $region43: #{tpu_custom_call.1} parent=11 // pred_region
          %s387 = ssub.s32 2048, 2048
          %388 = vsyncadd [#allocation11], %s387
          %s389 = sshll.u32 [#allocation12], 4
          %s390 = int_to_ptr.vmem [resolvable:$true] %s389
          %395 = dma.hbm_to_vmem [thread:$0]  %s8, 2048, %s390, [#allocation11], 128, 128, 8
        $region44: #{tpu_custom_call.1} parent=11 // pred_fallthru
          _
        // Predicated region
        $region45: #{tpu_custom_call.1} parent=11 // pred_check
          %p396 = pneg %p243
        $region46: #{tpu_custom_call.1} parent=11 // pred_check_branch
          %398 = sbr.rel (%p396) target = $region48
        $region47: #{tpu_custom_call.1} parent=11 // pred_region
          _
        $region48: #{tpu_custom_call.1} parent=11 // pred_fallthru
          _
        // Predicated region
        $region49: #{tpu_custom_call.1} parent=11 // pred_check
          %p399 = pneg %p264
        $region50: #{tpu_custom_call.1} parent=11 // pred_check_branch
          %401 = sbr.rel (%p399) target = $region52
        $region51: #{tpu_custom_call.1} parent=11 // pred_region
          %s403 = ssub.s32 2048, 2048
          %404 = vsyncadd [#allocation14], %s403
          %s405 = sshll.u32 [#allocation13], 4
          %s406 = int_to_ptr.vmem [resolvable:$true] %s405
          %411 = dma.hbm_to_vmem [thread:$0]  %s10, 2048, %s406, [#allocation14], 128, 128, 8
        $region52: #{tpu_custom_call.1} parent=11 // pred_fallthru
          _
        // Predicated region
        $region53: #{tpu_custom_call.1} parent=11 // pred_check
          %p412 = pneg %p285
        $region54: #{tpu_custom_call.1} parent=11 // pred_check_branch
          %414 = sbr.rel (%p412) target = $region56
        $region55: #{tpu_custom_call.1} parent=11 // pred_region
          _
        $region56: #{tpu_custom_call.1} parent=11 // pred_fallthru
          _
      $region12: #{tpu_custom_call.1} parent=5 // pred_fallthru
        _
      %p415 = scmp.lt.s32.totalorder %s28, 2
      // Predicated region
      $region57: #{tpu_custom_call.1} parent=5 // pred_check
        %p416 = pneg %p415
      $region58: #{tpu_custom_call.1} parent=5 // pred_check_branch
        %418 = sbr.rel (%p416) target = $region60
      $region59: #{tpu_custom_call.1} parent=5 // pred_region
        // Predicated region
        $region61: #{tpu_custom_call.1} parent=59 // pred_check
          %p419 = pneg %p69
        $region62: #{tpu_custom_call.1} parent=59 // pred_check_branch
          %421 = sbr.rel (%p419) target = $region64
        $region63: #{tpu_custom_call.1} parent=59 // pred_region
          %s422 = sand.u32 %s59, 1
          %s423 = scalar_lea.sflag [#allocation3], %s422
          %s424 = sand.u32 %s59, 1
          %s425 = smul.addr %s424, 16
          %s426 = scalar_lea.vmem [#allocation6], %s425
          %s427 = smul.u32 2, %s28
          %s429 = ssub.s32 256, 256
          %430 = vsyncadd %s423, %s429
          %s431 = smul.addr %s427, 128
          %s432 = scalar_lea.hbm %s1, %s431
          %s433 = sshll.u32 %s426, 4
          %s434 = int_to_ptr.vmem [resolvable:$true] %s433
          %439 = dma.hbm_to_vmem [thread:$0]  %s432, 256, %s434, %s423, 128, 128, 8
        $region64: #{tpu_custom_call.1} parent=59 // pred_fallthru
          _
      $region60: #{tpu_custom_call.1} parent=5 // pred_fallthru
        _
      %p440 = scmp.le.s32.totalorder 1, %s28
      %p441 = scmp.lt.s32.totalorder %s28, 3
      %p442 = pnand %p440, %p441
      %p443 = pneg %p442
      // Predicated region
      $region65: #{tpu_custom_call.1} parent=5 // pred_check
        _
      $region66: #{tpu_custom_call.1} parent=5 // pred_check_branch
        %445 = sbr.rel (%p442) target = $region68
      $region67: #{tpu_custom_call.1} parent=5 // pred_region
        %s446 = ssub.s32 %s28, 1
        // Predicated region
        $region69: #{tpu_custom_call.1} parent=67 // pred_check
          %p447 = pneg %p49
        $region70: #{tpu_custom_call.1} parent=67 // pred_check_branch
          %449 = sbr.rel (%p447) target = $region72
        $region71: #{tpu_custom_call.1} parent=67 // pred_region
          %450 = dma.done [#allocation5], 16
        $region72: #{tpu_custom_call.1} parent=67 // pred_fallthru
          _
        %s451 = sand.u32 %s62, 1
        %s452 = scalar_lea.sflag [#allocation3], %s451
        %s453 = sand.u32 %s62, 1
        %s454 = smul.addr %s453, 16
        %s455 = scalar_lea.vmem [#allocation6], %s454
        // Predicated region
        $region73: #{tpu_custom_call.1} parent=67 // pred_check
          %p456 = pneg %p75
        $region74: #{tpu_custom_call.1} parent=67 // pred_check_branch
          %458 = sbr.rel (%p456) target = $region76
        $region75: #{tpu_custom_call.1} parent=67 // pred_region
          %459 = dma.done %s452, 256
        $region76: #{tpu_custom_call.1} parent=67 // pred_fallthru
          _
        // Predicated region
        $region77: #{tpu_custom_call.1} parent=67 // pred_check
          %p460 = pneg %p96
        $region78: #{tpu_custom_call.1} parent=67 // pred_check_branch
          %462 = sbr.rel (%p460) target = $region80
        $region79: #{tpu_custom_call.1} parent=67 // pred_region
          %463 = dma.done [#allocation8], 2048
        $region80: #{tpu_custom_call.1} parent=67 // pred_fallthru
          _
        // Predicated region
        $region81: #{tpu_custom_call.1} parent=67 // pred_check
          %p464 = pneg %p138
        $region82: #{tpu_custom_call.1} parent=67 // pred_check_branch
          %466 = sbr.rel (%p464) target = $region84
        $region83: #{tpu_custom_call.1} parent=67 // pred_region
          %467 = dma.done [#allocation8], 2048
        $region84: #{tpu_custom_call.1} parent=67 // pred_fallthru
          _
        // Predicated region
        $region85: #{tpu_custom_call.1} parent=67 // pred_check
          %p468 = pneg %p180
        $region86: #{tpu_custom_call.1} parent=67 // pred_check_branch
          %470 = sbr.rel (%p468) target = $region88
        $region87: #{tpu_custom_call.1} parent=67 // pred_region
          %471 = dma.done [#allocation11], 2048
        $region88: #{tpu_custom_call.1} parent=67 // pred_fallthru
          _
        // Predicated region
        $region89: #{tpu_custom_call.1} parent=67 // pred_check
          %p472 = pneg %p222
        $region90: #{tpu_custom_call.1} parent=67 // pred_check_branch
          %474 = sbr.rel (%p472) target = $region92
        $region91: #{tpu_custom_call.1} parent=67 // pred_region
          %475 = dma.done [#allocation11], 2048
        $region92: #{tpu_custom_call.1} parent=67 // pred_fallthru
          _
        // Predicated region
        $region93: #{tpu_custom_call.1} parent=67 // pred_check
          %p476 = pneg %p264
        $region94: #{tpu_custom_call.1} parent=67 // pred_check_branch
          %478 = sbr.rel (%p476) target = $region96
        $region95: #{tpu_custom_call.1} parent=67 // pred_region
          %479 = dma.done [#allocation14], 2048
        $region96: #{tpu_custom_call.1} parent=67 // pred_fallthru
          _
        %480 = sfence
        %p481 = pneg %p49
        %p482 = pneg %p46
        %s483 = sand.u32 %s62, 1
        %s484 = scalar_lea.sflag [#allocation3], %s483
        %s485 = sand.u32 %s62, 1
        %s486 = smul.addr %s485, 16
        %s487 = scalar_lea.vmem [#allocation6], %s486
        %p488 = pneg %p75
        %p489 = pneg %p72
        %p490 = pneg %p96
        %p491 = pneg %p93
        %p492 = pneg %p117
        %p493 = pneg %p114
        %p494 = pneg %p138
        %p495 = pneg %p135
        %p496 = pneg %p159
        %p497 = pneg %p156
        %p498 = pneg %p180
        %p499 = pneg %p177
        %p500 = pneg %p201
        %p501 = pneg %p198
        %p502 = pneg %p222
        %p503 = pneg %p219
        %p504 = pneg %p243
        %p505 = pneg %p240
        %p506 = pneg %p264
        %p507 = pneg %p261
        %p508 = pneg %p285
        %p509 = pneg %p282
        %p510 = pneg %p311
        %p511 = pneg %p308
        %s512 = sand.u32 %s298, 1
        %s513 = scalar_lea.sflag [#allocation4], %s512
        %s514 = sand.u32 %s298, 1
        %s515 = smul.addr %s514, 16
        %s516 = scalar_lea.vmem [#allocation15], %s515
        %s517 = smul.u32 2, %s33
        %s518 = smul.u32 2, %s33
        %v519 = vld [vmem:[%s455] sm:$0xff]
        %v520 = vld [vmem:[%s455 + $0x8] sm:$0xff]
        %v521 = vld [vmem:[#allocation7] sm:$0xff]
        %v522 = vld [vmem:[#allocation7 + $0x8] sm:$0xff]
        %v523 = vld [vmem:[#allocation7 + $0x10] sm:$0xff]
        %v524 = vld [vmem:[#allocation7 + $0x18] sm:$0xff]
        %v525 = vld [vmem:[#allocation7 + $0x20] sm:$0xff]
        %v526 = vld [vmem:[#allocation7 + $0x28] sm:$0xff]
        %v527 = vld [vmem:[#allocation7 + $0x30] sm:$0xff]
        %v528 = vld [vmem:[#allocation7 + $0x38] sm:$0xff]
        %v529 = vld [vmem:[#allocation7 + $0x40] sm:$0xff]
        %v530 = vld [vmem:[#allocation7 + $0x48] sm:$0xff]
        %v531 = vld [vmem:[#allocation7 + $0x50] sm:$0xff]
        %v532 = vld [vmem:[#allocation7 + $0x58] sm:$0xff]
        %v533 = vld [vmem:[#allocation7 + $0x60] sm:$0xff]
        %v534 = vld [vmem:[#allocation7 + $0x68] sm:$0xff]
        %v535 = vld [vmem:[#allocation7 + $0x70] sm:$0xff]
        %v536 = vld [vmem:[#allocation7 + $0x78] sm:$0xff]
        %v537 = vld [vmem:[%s3] sm:$0x1]
        %v539 = vlaneseq
        %v540 = vshrl.u32 %v539, 7
        %v541 = vsub.s32 0, %v540
        %v542 = vrot.slane %v537, %v541
        %544 = vmatprep.subr.mxu0 0.0
        %545 = vmatpush1.msra.mxu0 %v521
        %546 = vmatprep.subr.mxu0 0.0
        %547 = vmatpush1.msra.mxu0 %v522
        %548 = vmatprep.subr.mxu0 0.0
        %549 = vmatpush1.msra.mxu0 %v523
        %550 = vmatprep.subr.mxu0 0.0
        %551 = vmatpush1.msra.mxu0 %v524
        %552 = vmatprep.subr.mxu0 0.0
        %553 = vmatpush1.msra.mxu0 %v525
        %554 = vmatprep.subr.mxu0 0.0
        %555 = vmatpush1.msra.mxu0 %v526
        %556 = vmatprep.subr.mxu0 0.0
        %557 = vmatpush1.msra.mxu0 %v527
        %558 = vmatprep.subr.mxu0 0.0
        %559 = vmatpush1.msra.mxu0 %v528
        %560 = vmatprep.subr.mxu0 0.0
        %561 = vmatpush1.msra.mxu0 %v529
        %562 = vmatprep.subr.mxu0 0.0
        %563 = vmatpush1.msra.mxu0 %v530
        %564 = vmatprep.subr.mxu0 0.0
        %565 = vmatpush1.msra.mxu0 %v531
        %566 = vmatprep.subr.mxu0 0.0
        %567 = vmatpush1.msra.mxu0 %v532
        %568 = vmatprep.subr.mxu0 0.0
        %569 = vmatpush1.msra.mxu0 %v533
        %570 = vmatprep.subr.mxu0 0.0
        %571 = vmatpush1.msra.mxu0 %v534
        %572 = vmatprep.subr.mxu0 0.0
        %573 = vmatpush1.msra.mxu0 %v535
        %574 = vmatprep.subr.mxu0 0.0
        %575 = vmatpush1.msra.mxu0 %v536
        %576 = vmatprep.subr.mxu0 0.0
        %577 = vmatpush1.msra.mxu0 0.0
        %578 = vmatprep.subr.mxu0 0.0
        %579 = vmatpush1.msra.mxu0 0.0
        %580 = vmatprep.subr.mxu0 0.0
        %581 = vmatpush1.msra.mxu0 0.0
        %582 = vmatprep.subr.mxu0 0.0
        %583 = vmatpush1.msra.mxu0 0.0
        %584 = vmatprep.subr.mxu0 0.0
        %585 = vmatpush1.msra.mxu0 0.0
        %586 = vmatprep.subr.mxu0 0.0
        %587 = vmatpush1.msra.mxu0 0.0
        %588 = vmatprep.subr.mxu0 0.0
        %589 = vmatpush1.msra.mxu0 0.0
        %590 = vmatprep.subr.mxu0 0.0
        %591 = vmatpush1.msra.mxu0 0.0
        %592 = vmatprep.subr.mxu0 0.0
        %593 = vmatpush1.msra.mxu0 0.0
        %594 = vmatprep.subr.mxu0 0.0
        %595 = vmatpush1.msra.mxu0 0.0
        %596 = vmatprep.subr.mxu0 0.0
        %597 = vmatpush1.msra.mxu0 0.0
        %598 = vmatprep.subr.mxu0 0.0
        %599 = vmatpush1.msra.mxu0 0.0
        %600 = vmatprep.subr.mxu0 0.0
        %601 = vmatpush1.msra.mxu0 0.0
        %602 = vmatprep.subr.mxu0 0.0
        %603 = vmatpush1.msra.mxu0 0.0
        %604 = vmatprep.subr.mxu0 0.0
        %605 = vmatpush1.msra.mxu0 0.0
        %606 = vmatprep.subr.mxu0 0.0
        %607 = vmatpush1.msra.mxu0 0.0
        %608 = vmatprep.mubr.f32.mxu0 0.0
        %609 = vmatmul.mubr.f32.gmra.mrb[0].mxu0 %v519
        %v610 = vpop.f32.mrb[0].mxu0
        %v611 = vadd.f32 %v542, %v610
        %v612 = vpop.f32.mrb[0].mxu0
        %613 = vmatprep.mubr.f32.mxu0 0.0
        %614 = vmatmul.mubr.f32.gmra.mrb[0].mxu0 %v520
        %v615 = vpop.f32.mrb[0].mxu0
        %v616 = vadd.f32 %v542, %v615
        %v617 = vpop.f32.mrb[0].mxu0
        %618 = vdwg.mxu0
        %s619 = sld [smem:[#allocation2]]
        %vm620 = vcmp.ge.f32.partialorder %v611, 0.0
        %vm621 = vcmp.ge.f32.partialorder %v616, 0.0
        %v622 = vstv %s619
        %v623 = vmul.f32 %v622, %v611
        %v624 = vmul.f32 %v622, %v616
        %v625 = vsel %vm620, %v611, %v623
        %v626 = vsel %vm621, %v616, %v624
        %v627 = vld [vmem:[#allocation9] sm:$0xff]
        %v628 = vld [vmem:[#allocation9 + $0x8] sm:$0xff]
        %v629 = vld [vmem:[#allocation9 + $0x10] sm:$0xff]
        %v630 = vld [vmem:[#allocation9 + $0x18] sm:$0xff]
        %v631 = vld [vmem:[#allocation9 + $0x20] sm:$0xff]
        %v632 = vld [vmem:[#allocation9 + $0x28] sm:$0xff]
        %v633 = vld [vmem:[#allocation9 + $0x30] sm:$0xff]
        %v634 = vld [vmem:[#allocation9 + $0x38] sm:$0xff]
        %v635 = vld [vmem:[#allocation9 + $0x40] sm:$0xff]
        %v636 = vld [vmem:[#allocation9 + $0x48] sm:$0xff]
        %v637 = vld [vmem:[#allocation9 + $0x50] sm:$0xff]
        %v638 = vld [vmem:[#allocation9 + $0x58] sm:$0xff]
        %v639 = vld [vmem:[#allocation9 + $0x60] sm:$0xff]
        %v640 = vld [vmem:[#allocation9 + $0x68] sm:$0xff]
        %v641 = vld [vmem:[#allocation9 + $0x70] sm:$0xff]
        %v642 = vld [vmem:[#allocation9 + $0x78] sm:$0xff]
        %v643 = vld [vmem:[%s5] sm:$0x1]
        %v645 = vlaneseq
        %v646 = vshrl.u32 %v645, 7
        %v647 = vsub.s32 0, %v646
        %v648 = vrot.slane %v643, %v647
        %650 = vmatprep.subr.mxu0 0.0
        %651 = vmatpush1.msra.mxu0 %v627
        %652 = vmatprep.subr.mxu0 0.0
        %653 = vmatpush1.msra.mxu0 %v628
        %654 = vmatprep.subr.mxu0 0.0
        %655 = vmatpush1.msra.mxu0 %v629
        %656 = vmatprep.subr.mxu0 0.0
        %657 = vmatpush1.msra.mxu0 %v630
        %658 = vmatprep.subr.mxu0 0.0
        %659 = vmatpush1.msra.mxu0 %v631
        %660 = vmatprep.subr.mxu0 0.0
        %661 = vmatpush1.msra.mxu0 %v632
        %662 = vmatprep.subr.mxu0 0.0
        %663 = vmatpush1.msra.mxu0 %v633
        %664 = vmatprep.subr.mxu0 0.0
        %665 = vmatpush1.msra.mxu0 %v634
        %666 = vmatprep.subr.mxu0 0.0
        %667 = vmatpush1.msra.mxu0 %v635
        %668 = vmatprep.subr.mxu0 0.0
        %669 = vmatpush1.msra.mxu0 %v636
        %670 = vmatprep.subr.mxu0 0.0
        %671 = vmatpush1.msra.mxu0 %v637
        %672 = vmatprep.subr.mxu0 0.0
        %673 = vmatpush1.msra.mxu0 %v638
        %674 = vmatprep.subr.mxu0 0.0
        %675 = vmatpush1.msra.mxu0 %v639
        %676 = vmatprep.subr.mxu0 0.0
        %677 = vmatpush1.msra.mxu0 %v640
        %678 = vmatprep.subr.mxu0 0.0
        %679 = vmatpush1.msra.mxu0 %v641
        %680 = vmatprep.subr.mxu0 0.0
        %681 = vmatpush1.msra.mxu0 %v642
        %682 = vmatprep.subr.mxu0 0.0
        %683 = vmatpush1.msra.mxu0 0.0
        %684 = vmatprep.subr.mxu0 0.0
        %685 = vmatpush1.msra.mxu0 0.0
        %686 = vmatprep.subr.mxu0 0.0
        %687 = vmatpush1.msra.mxu0 0.0
        %688 = vmatprep.subr.mxu0 0.0
        %689 = vmatpush1.msra.mxu0 0.0
        %690 = vmatprep.subr.mxu0 0.0
        %691 = vmatpush1.msra.mxu0 0.0
        %692 = vmatprep.subr.mxu0 0.0
        %693 = vmatpush1.msra.mxu0 0.0
        %694 = vmatprep.subr.mxu0 0.0
        %695 = vmatpush1.msra.mxu0 0.0
        %696 = vmatprep.subr.mxu0 0.0
        %697 = vmatpush1.msra.mxu0 0.0
        %698 = vmatprep.subr.mxu0 0.0
        %699 = vmatpush1.msra.mxu0 0.0
        %700 = vmatprep.subr.mxu0 0.0
        %701 = vmatpush1.msra.mxu0 0.0
        %702 = vmatprep.subr.mxu0 0.0
        %703 = vmatpush1.msra.mxu0 0.0
        %704 = vmatprep.subr.mxu0 0.0
        %705 = vmatpush1.msra.mxu0 0.0
        %706 = vmatprep.subr.mxu0 0.0
        %707 = vmatpush1.msra.mxu0 0.0
        %708 = vmatprep.subr.mxu0 0.0
        %709 = vmatpush1.msra.mxu0 0.0
        %710 = vmatprep.subr.mxu0 0.0
        %711 = vmatpush1.msra.mxu0 0.0
        %712 = vmatprep.subr.mxu0 0.0
        %713 = vmatpush1.msra.mxu0 0.0
        %714 = vmatprep.mubr.f32.mxu0 0.0
        %715 = vmatmul.mubr.f32.gmra.mrb[0].mxu0 %v625
        %v716 = vpop.f32.mrb[0].mxu0
        %v717 = vadd.f32 %v648, %v716
        %v718 = vpop.f32.mrb[0].mxu0
        %719 = vmatprep.mubr.f32.mxu0 0.0
        %720 = vmatmul.mubr.f32.gmra.mrb[0].mxu0 %v626
        %v721 = vpop.f32.mrb[0].mxu0
        %v722 = vadd.f32 %v648, %v721
        %v723 = vpop.f32.mrb[0].mxu0
        %724 = vdwg.mxu0
        %s725 = sld [smem:[#allocation2 + $0x1]]
        %vm726 = vcmp.ge.f32.partialorder %v717, 0.0
        %vm727 = vcmp.ge.f32.partialorder %v722, 0.0
        %v728 = vstv %s725
        %v729 = vmul.f32 %v728, %v717
        %v730 = vmul.f32 %v728, %v722
        %v731 = vsel %vm726, %v717, %v729
        %v732 = vsel %vm727, %v722, %v730
        %v733 = vld [vmem:[#allocation10] sm:$0xff]
        %v734 = vld [vmem:[#allocation10 + $0x8] sm:$0xff]
        %v735 = vld [vmem:[#allocation10 + $0x10] sm:$0xff]
        %v736 = vld [vmem:[#allocation10 + $0x18] sm:$0xff]
        %v737 = vld [vmem:[#allocation10 + $0x20] sm:$0xff]
        %v738 = vld [vmem:[#allocation10 + $0x28] sm:$0xff]
        %v739 = vld [vmem:[#allocation10 + $0x30] sm:$0xff]
        %v740 = vld [vmem:[#allocation10 + $0x38] sm:$0xff]
        %v741 = vld [vmem:[#allocation10 + $0x40] sm:$0xff]
        %v742 = vld [vmem:[#allocation10 + $0x48] sm:$0xff]
        %v743 = vld [vmem:[#allocation10 + $0x50] sm:$0xff]
        %v744 = vld [vmem:[#allocation10 + $0x58] sm:$0xff]
        %v745 = vld [vmem:[#allocation10 + $0x60] sm:$0xff]
        %v746 = vld [vmem:[#allocation10 + $0x68] sm:$0xff]
        %v747 = vld [vmem:[#allocation10 + $0x70] sm:$0xff]
        %v748 = vld [vmem:[#allocation10 + $0x78] sm:$0xff]
        %v749 = vld [vmem:[%s7] sm:$0x1]
        %v751 = vlaneseq
        %v752 = vshrl.u32 %v751, 7
        %v753 = vsub.s32 0, %v752
        %v754 = vrot.slane %v749, %v753
        %756 = vmatprep.subr.mxu0 0.0
        %757 = vmatpush1.msra.mxu0 %v733
        %758 = vmatprep.subr.mxu0 0.0
        %759 = vmatpush1.msra.mxu0 %v734
        %760 = vmatprep.subr.mxu0 0.0
        %761 = vmatpush1.msra.mxu0 %v735
        %762 = vmatprep.subr.mxu0 0.0
        %763 = vmatpush1.msra.mxu0 %v736
        %764 = vmatprep.subr.mxu0 0.0
        %765 = vmatpush1.msra.mxu0 %v737
        %766 = vmatprep.subr.mxu0 0.0
        %767 = vmatpush1.msra.mxu0 %v738
        %768 = vmatprep.subr.mxu0 0.0
        %769 = vmatpush1.msra.mxu0 %v739
        %770 = vmatprep.subr.mxu0 0.0
        %771 = vmatpush1.msra.mxu0 %v740
        %772 = vmatprep.subr.mxu0 0.0
        %773 = vmatpush1.msra.mxu0 %v741
        %774 = vmatprep.subr.mxu0 0.0
        %775 = vmatpush1.msra.mxu0 %v742
        %776 = vmatprep.subr.mxu0 0.0
        %777 = vmatpush1.msra.mxu0 %v743
        %778 = vmatprep.subr.mxu0 0.0
        %779 = vmatpush1.msra.mxu0 %v744
        %780 = vmatprep.subr.mxu0 0.0
        %781 = vmatpush1.msra.mxu0 %v745
        %782 = vmatprep.subr.mxu0 0.0
        %783 = vmatpush1.msra.mxu0 %v746
        %784 = vmatprep.subr.mxu0 0.0
        %785 = vmatpush1.msra.mxu0 %v747
        %786 = vmatprep.subr.mxu0 0.0
        %787 = vmatpush1.msra.mxu0 %v748
        %788 = vmatprep.subr.mxu0 0.0
        %789 = vmatpush1.msra.mxu0 0.0
        %790 = vmatprep.subr.mxu0 0.0
        %791 = vmatpush1.msra.mxu0 0.0
        %792 = vmatprep.subr.mxu0 0.0
        %793 = vmatpush1.msra.mxu0 0.0
        %794 = vmatprep.subr.mxu0 0.0
        %795 = vmatpush1.msra.mxu0 0.0
        %796 = vmatprep.subr.mxu0 0.0
        %797 = vmatpush1.msra.mxu0 0.0
        %798 = vmatprep.subr.mxu0 0.0
        %799 = vmatpush1.msra.mxu0 0.0
        %800 = vmatprep.subr.mxu0 0.0
        %801 = vmatpush1.msra.mxu0 0.0
        %802 = vmatprep.subr.mxu0 0.0
        %803 = vmatpush1.msra.mxu0 0.0
        %804 = vmatprep.subr.mxu0 0.0
        %805 = vmatpush1.msra.mxu0 0.0
        %806 = vmatprep.subr.mxu0 0.0
        %807 = vmatpush1.msra.mxu0 0.0
        %808 = vmatprep.subr.mxu0 0.0
        %809 = vmatpush1.msra.mxu0 0.0
        %810 = vmatprep.subr.mxu0 0.0
        %811 = vmatpush1.msra.mxu0 0.0
        %812 = vmatprep.subr.mxu0 0.0
        %813 = vmatpush1.msra.mxu0 0.0
        %814 = vmatprep.subr.mxu0 0.0
        %815 = vmatpush1.msra.mxu0 0.0
        %816 = vmatprep.subr.mxu0 0.0
        %817 = vmatpush1.msra.mxu0 0.0
        %818 = vmatprep.subr.mxu0 0.0
        %819 = vmatpush1.msra.mxu0 0.0
        %820 = vmatprep.mubr.f32.mxu0 0.0
        %821 = vmatmul.mubr.f32.gmra.mrb[0].mxu0 %v731
        %v822 = vpop.f32.mrb[0].mxu0
        %v823 = vadd.f32 %v754, %v822
        %v824 = vpop.f32.mrb[0].mxu0
        %825 = vmatprep.mubr.f32.mxu0 0.0
        %826 = vmatmul.mubr.f32.gmra.mrb[0].mxu0 %v732
        %v827 = vpop.f32.mrb[0].mxu0
        %v828 = vadd.f32 %v754, %v827
        %v829 = vpop.f32.mrb[0].mxu0
        %830 = vdwg.mxu0
        %s831 = sld [smem:[#allocation2 + $0x2]]
        %vm832 = vcmp.ge.f32.partialorder %v823, 0.0
        %vm833 = vcmp.ge.f32.partialorder %v828, 0.0
        %v834 = vstv %s831
        %v835 = vmul.f32 %v834, %v823
        %v836 = vmul.f32 %v834, %v828
        %v837 = vsel %vm832, %v823, %v835
        %v838 = vsel %vm833, %v828, %v836
        %v839 = vld [vmem:[#allocation12] sm:$0xff]
        %v840 = vld [vmem:[#allocation12 + $0x8] sm:$0xff]
        %v841 = vld [vmem:[#allocation12 + $0x10] sm:$0xff]
        %v842 = vld [vmem:[#allocation12 + $0x18] sm:$0xff]
        %v843 = vld [vmem:[#allocation12 + $0x20] sm:$0xff]
        %v844 = vld [vmem:[#allocation12 + $0x28] sm:$0xff]
        %v845 = vld [vmem:[#allocation12 + $0x30] sm:$0xff]
        %v846 = vld [vmem:[#allocation12 + $0x38] sm:$0xff]
        %v847 = vld [vmem:[#allocation12 + $0x40] sm:$0xff]
        %v848 = vld [vmem:[#allocation12 + $0x48] sm:$0xff]
        %v849 = vld [vmem:[#allocation12 + $0x50] sm:$0xff]
        %v850 = vld [vmem:[#allocation12 + $0x58] sm:$0xff]
        %v851 = vld [vmem:[#allocation12 + $0x60] sm:$0xff]
        %v852 = vld [vmem:[#allocation12 + $0x68] sm:$0xff]
        %v853 = vld [vmem:[#allocation12 + $0x70] sm:$0xff]
        %v854 = vld [vmem:[#allocation12 + $0x78] sm:$0xff]
        %v855 = vld [vmem:[%s9] sm:$0x1]
        %v857 = vlaneseq
        %v858 = vshrl.u32 %v857, 7
        %v859 = vsub.s32 0, %v858
        %v860 = vrot.slane %v855, %v859
        %862 = vmatprep.subr.mxu0 0.0
        %863 = vmatpush1.msra.mxu0 %v839
        %864 = vmatprep.subr.mxu0 0.0
        %865 = vmatpush1.msra.mxu0 %v840
        %866 = vmatprep.subr.mxu0 0.0
        %867 = vmatpush1.msra.mxu0 %v841
        %868 = vmatprep.subr.mxu0 0.0
        %869 = vmatpush1.msra.mxu0 %v842
        %870 = vmatprep.subr.mxu0 0.0
        %871 = vmatpush1.msra.mxu0 %v843
        %872 = vmatprep.subr.mxu0 0.0
        %873 = vmatpush1.msra.mxu0 %v844
        %874 = vmatprep.subr.mxu0 0.0
        %875 = vmatpush1.msra.mxu0 %v845
        %876 = vmatprep.subr.mxu0 0.0
        %877 = vmatpush1.msra.mxu0 %v846
        %878 = vmatprep.subr.mxu0 0.0
        %879 = vmatpush1.msra.mxu0 %v847
        %880 = vmatprep.subr.mxu0 0.0
        %881 = vmatpush1.msra.mxu0 %v848
        %882 = vmatprep.subr.mxu0 0.0
        %883 = vmatpush1.msra.mxu0 %v849
        %884 = vmatprep.subr.mxu0 0.0
        %885 = vmatpush1.msra.mxu0 %v850
        %886 = vmatprep.subr.mxu0 0.0
        %887 = vmatpush1.msra.mxu0 %v851
        %888 = vmatprep.subr.mxu0 0.0
        %889 = vmatpush1.msra.mxu0 %v852
        %890 = vmatprep.subr.mxu0 0.0
        %891 = vmatpush1.msra.mxu0 %v853
        %892 = vmatprep.subr.mxu0 0.0
        %893 = vmatpush1.msra.mxu0 %v854
        %894 = vmatprep.subr.mxu0 0.0
        %895 = vmatpush1.msra.mxu0 0.0
        %896 = vmatprep.subr.mxu0 0.0
        %897 = vmatpush1.msra.mxu0 0.0
        %898 = vmatprep.subr.mxu0 0.0
        %899 = vmatpush1.msra.mxu0 0.0
        %900 = vmatprep.subr.mxu0 0.0
        %901 = vmatpush1.msra.mxu0 0.0
        %902 = vmatprep.subr.mxu0 0.0
        %903 = vmatpush1.msra.mxu0 0.0
        %904 = vmatprep.subr.mxu0 0.0
        %905 = vmatpush1.msra.mxu0 0.0
        %906 = vmatprep.subr.mxu0 0.0
        %907 = vmatpush1.msra.mxu0 0.0
        %908 = vmatprep.subr.mxu0 0.0
        %909 = vmatpush1.msra.mxu0 0.0
        %910 = vmatprep.subr.mxu0 0.0
        %911 = vmatpush1.msra.mxu0 0.0
        %912 = vmatprep.subr.mxu0 0.0
        %913 = vmatpush1.msra.mxu0 0.0
        %914 = vmatprep.subr.mxu0 0.0
        %915 = vmatpush1.msra.mxu0 0.0
        %916 = vmatprep.subr.mxu0 0.0
        %917 = vmatpush1.msra.mxu0 0.0
        %918 = vmatprep.subr.mxu0 0.0
        %919 = vmatpush1.msra.mxu0 0.0
        %920 = vmatprep.subr.mxu0 0.0
        %921 = vmatpush1.msra.mxu0 0.0
        %922 = vmatprep.subr.mxu0 0.0
        %923 = vmatpush1.msra.mxu0 0.0
        %924 = vmatprep.subr.mxu0 0.0
        %925 = vmatpush1.msra.mxu0 0.0
        %926 = vmatprep.mubr.f32.mxu0 0.0
        %927 = vmatmul.mubr.f32.gmra.mrb[0].mxu0 %v837
        %v928 = vpop.f32.mrb[0].mxu0
        %v929 = vadd.f32 %v860, %v928
        %v930 = vpop.f32.mrb[0].mxu0
        %931 = vmatprep.mubr.f32.mxu0 0.0
        %932 = vmatmul.mubr.f32.gmra.mrb[0].mxu0 %v838
        %v933 = vpop.f32.mrb[0].mxu0
        %v934 = vadd.f32 %v860, %v933
        %v935 = vpop.f32.mrb[0].mxu0
        %936 = vdwg.mxu0
        %s937 = sld [smem:[#allocation2 + $0x3]]
        %vm938 = vcmp.ge.f32.partialorder %v929, 0.0
        %vm939 = vcmp.ge.f32.partialorder %v934, 0.0
        %v940 = vstv %s937
        %v941 = vmul.f32 %v940, %v929
        %v942 = vmul.f32 %v940, %v934
        %v943 = vsel %vm938, %v929, %v941
        %v944 = vsel %vm939, %v934, %v942
        %s945 = sld [smem:[#allocation2 + $0x4]]
        %vm946 = vcmp.ge.f32.partialorder %v943, 0.0
        %vm947 = vcmp.ge.f32.partialorder %v944, 0.0
        %v948 = vstv %s945
        %v949 = vmul.f32 %v948, %v943
        %v950 = vmul.f32 %v948, %v944
        %v951 = vsel %vm946, %v943, %v949
        %v952 = vsel %vm947, %v944, %v950
        %v953 = vadd.f32 %v951, %v519
        %v954 = vadd.f32 %v952, %v520
        %v955 = vld [vmem:[#allocation13] sm:$0xff]
        %v956 = vld [vmem:[#allocation13 + $0x8] sm:$0xff]
        %v957 = vld [vmem:[#allocation13 + $0x10] sm:$0xff]
        %v958 = vld [vmem:[#allocation13 + $0x18] sm:$0xff]
        %v959 = vld [vmem:[#allocation13 + $0x20] sm:$0xff]
        %v960 = vld [vmem:[#allocation13 + $0x28] sm:$0xff]
        %v961 = vld [vmem:[#allocation13 + $0x30] sm:$0xff]
        %v962 = vld [vmem:[#allocation13 + $0x38] sm:$0xff]
        %v963 = vld [vmem:[#allocation13 + $0x40] sm:$0xff]
        %v964 = vld [vmem:[#allocation13 + $0x48] sm:$0xff]
        %v965 = vld [vmem:[#allocation13 + $0x50] sm:$0xff]
        %v966 = vld [vmem:[#allocation13 + $0x58] sm:$0xff]
        %v967 = vld [vmem:[#allocation13 + $0x60] sm:$0xff]
        %v968 = vld [vmem:[#allocation13 + $0x68] sm:$0xff]
        %v969 = vld [vmem:[#allocation13 + $0x70] sm:$0xff]
        %v970 = vld [vmem:[#allocation13 + $0x78] sm:$0xff]
        %v971 = vld [vmem:[%s11] sm:$0x1]
        %v973 = vlaneseq
        %v974 = vshrl.u32 %v973, 7
        %v975 = vsub.s32 0, %v974
        %v976 = vrot.slane %v971, %v975
        %978 = vmatprep.subr.mxu0 0.0
        %979 = vmatpush1.msra.mxu0 %v955
        %980 = vmatprep.subr.mxu0 0.0
        %981 = vmatpush1.msra.mxu0 %v956
        %982 = vmatprep.subr.mxu0 0.0
        %983 = vmatpush1.msra.mxu0 %v957
        %984 = vmatprep.subr.mxu0 0.0
        %985 = vmatpush1.msra.mxu0 %v958
        %986 = vmatprep.subr.mxu0 0.0
        %987 = vmatpush1.msra.mxu0 %v959
        %988 = vmatprep.subr.mxu0 0.0
        %989 = vmatpush1.msra.mxu0 %v960
        %990 = vmatprep.subr.mxu0 0.0
        %991 = vmatpush1.msra.mxu0 %v961
        %992 = vmatprep.subr.mxu0 0.0
        %993 = vmatpush1.msra.mxu0 %v962
        %994 = vmatprep.subr.mxu0 0.0
        %995 = vmatpush1.msra.mxu0 %v963
        %996 = vmatprep.subr.mxu0 0.0
        %997 = vmatpush1.msra.mxu0 %v964
        %998 = vmatprep.subr.mxu0 0.0
        %999 = vmatpush1.msra.mxu0 %v965
        %1000 = vmatprep.subr.mxu0 0.0
        %1001 = vmatpush1.msra.mxu0 %v966
        %1002 = vmatprep.subr.mxu0 0.0
        %1003 = vmatpush1.msra.mxu0 %v967
        %1004 = vmatprep.subr.mxu0 0.0
        %1005 = vmatpush1.msra.mxu0 %v968
        %1006 = vmatprep.subr.mxu0 0.0
        %1007 = vmatpush1.msra.mxu0 %v969
        %1008 = vmatprep.subr.mxu0 0.0
        %1009 = vmatpush1.msra.mxu0 %v970
        %1010 = vmatprep.subr.mxu0 0.0
        %1011 = vmatpush1.msra.mxu0 0.0
        %1012 = vmatprep.subr.mxu0 0.0
        %1013 = vmatpush1.msra.mxu0 0.0
        %1014 = vmatprep.subr.mxu0 0.0
        %1015 = vmatpush1.msra.mxu0 0.0
        %1016 = vmatprep.subr.mxu0 0.0
        %1017 = vmatpush1.msra.mxu0 0.0
        %1018 = vmatprep.subr.mxu0 0.0
        %1019 = vmatpush1.msra.mxu0 0.0
        %1020 = vmatprep.subr.mxu0 0.0
        %1021 = vmatpush1.msra.mxu0 0.0
        %1022 = vmatprep.subr.mxu0 0.0
        %1023 = vmatpush1.msra.mxu0 0.0
        %1024 = vmatprep.subr.mxu0 0.0
        %1025 = vmatpush1.msra.mxu0 0.0
        %1026 = vmatprep.subr.mxu0 0.0
        %1027 = vmatpush1.msra.mxu0 0.0
        %1028 = vmatprep.subr.mxu0 0.0
        %1029 = vmatpush1.msra.mxu0 0.0
        %1030 = vmatprep.subr.mxu0 0.0
        %1031 = vmatpush1.msra.mxu0 0.0
        %1032 = vmatprep.subr.mxu0 0.0
        %1033 = vmatpush1.msra.mxu0 0.0
        %1034 = vmatprep.subr.mxu0 0.0
        %1035 = vmatpush1.msra.mxu0 0.0
        %1036 = vmatprep.subr.mxu0 0.0
        %1037 = vmatpush1.msra.mxu0 0.0
        %1038 = vmatprep.subr.mxu0 0.0
        %1039 = vmatpush1.msra.mxu0 0.0
        %1040 = vmatprep.subr.mxu0 0.0
        %1041 = vmatpush1.msra.mxu0 0.0
        %1042 = vmatprep.mubr.f32.mxu0 0.0
        %1043 = vmatmul.mubr.f32.gmra.mrb[0].mxu0 %v953
        %v1044 = vpop.f32.mrb[0].mxu0
        %v1045 = vadd.f32 %v976, %v1044
        %v1046 = vpop.f32.mrb[0].mxu0
        %1047 = vmatprep.mubr.f32.mxu0 0.0
        %1048 = vmatmul.mubr.f32.gmra.mrb[0].mxu0 %v954
        %v1049 = vpop.f32.mrb[0].mxu0
        %v1050 = vadd.f32 %v976, %v1049
        %v1051 = vpop.f32.mrb[0].mxu0
        %1052 = vdwg.mxu0
        %1053 = vst [vmem:[%s516] sm:$0xff] %v1045
        %1054 = vst [vmem:[%s516 + $0x8] sm:$0xff] %v1050
        %s1055 = sand.u32 %s298, 1
        %s1056 = scalar_lea.sflag [#allocation4], %s1055
        %s1057 = sand.u32 %s298, 1
        %s1058 = smul.addr %s1057, 16
        %s1059 = scalar_lea.vmem [#allocation15], %s1058
        // Predicated region
        $region97: #{tpu_custom_call.1} parent=67 // pred_check
          %p1060 = pneg %p308
        $region98: #{tpu_custom_call.1} parent=67 // pred_check_branch
          %1062 = sbr.rel (%p1060) target = $region100
        $region99: #{tpu_custom_call.1} parent=67 // pred_region
          %s1063 = smul.u32 2, %s33
          %s1065 = ssub.s32 256, 256
          %1066 = vsyncadd %s1056, %s1065
          %s1067 = smul.addr %s1063, 128
          %s1068 = scalar_lea.hbm %s12, %s1067
          %s1069 = sshll.u32 %s1059, 4
          %s1070 = int_to_ptr.vmem [resolvable:$true] %s1069
          %1075 = dma.vmem_to_hbm [thread:$0]  %s1070, 256, %s1068, %s1056, 128, 128, 8
        $region100: #{tpu_custom_call.1} parent=67 // pred_fallthru
          _
      $region68: #{tpu_custom_call.1} parent=5 // pred_fallthru
        _
      %p1076 = scmp.le.s32.totalorder 2, %s28
      // Predicated region
      $region101: #{tpu_custom_call.1} parent=5 // pred_check
        %p1077 = pneg %p1076
      $region102: #{tpu_custom_call.1} parent=5 // pred_check_branch
        %1079 = sbr.rel (%p1077) target = $region104
      $region103: #{tpu_custom_call.1} parent=5 // pred_region
        %s1080 = ssub.s32 %s28, 2
        // Predicated region
        $region105: #{tpu_custom_call.1} parent=103 // pred_check
          %p1081 = pneg %p314
        $region106: #{tpu_custom_call.1} parent=103 // pred_check_branch
          %1083 = sbr.rel (%p1081) target = $region108
        $region107: #{tpu_custom_call.1} parent=103 // pred_region
          %s1084 = sand.u32 %s299, 1
          %s1085 = scalar_lea.sflag [#allocation4], %s1084
          %s1086 = sand.u32 %s299, 1
          %s1087 = smul.addr %s1086, 16
          %s1088 = scalar_lea.vmem [#allocation15], %s1087
          %1089 = dma.done %s1085, 256
        $region108: #{tpu_custom_call.1} parent=103 // pred_fallthru
          _
      $region104: #{tpu_custom_call.1} parent=5 // pred_fallthru
        _
    $region6: #{tpu_custom_call.1} parent=1 // loop_footer
      %s32 = sadd.s32 1, %s28
    $region7: #{tpu_custom_call.1} parent=1 // loop_footer_branch
      %27 = sbr.rel target = $region3
    $region8: #{tpu_custom_call.1} parent=1 // loop_exit
      _
    %1090 = vsyncpa [#allocation3], 1
    %s1091 = scalar_lea.sflag [#allocation3], 1
    %1092 = vsyncpa %s1091, 1
    %1093 = vsyncpa [#allocation8], 1
    %1094 = vsyncpa [#allocation11], 1
    %1095 = vsyncpa [#allocation14], 1
    %1096 = vsyncpa [#allocation4], 1
    %s1097 = scalar_lea.sflag [#allocation4], 1
    %1098 = vsyncpa %s1097, 1
    %1099 = vsyncpa [#allocation5], 1
    %s1100 = scalar_lea.sflag [#allocation5], 1
    %1101 = vsyncpa %s1100, 1

</llo_original>
